<compile_context>
chip_gen: v5e
topology: v5e:2x2
jax: 0.10.0
libtpu: 0.0.40
codegen_flags: <defaults>
</compile_context>

<pallas_src>
import jax
import jax.numpy as jnp
import numpy as np
from jax.experimental import pallas as pl
from jax.experimental.pallas import tpu as pltpu

EPS = 1e-5
_VMEM_LIMIT = 32 * 1024 * 1024  # safe on v5e/v6e (128 MiB) and v7x (64 MiB)


def _compiler_params():
    return pltpu.CompilerParams(
        dimension_semantics=("parallel", "parallel"),  # grid = (N, row_tiles)
        vmem_limit_bytes=_VMEM_LIMIT)


def _pick_tile_rows(H, max_rows=32):
    """Largest row tile that divides H (whole image if it is small)."""
    if H <= max_rows:
        return H
    for th in (32, 24, 16, 8):
        if th <= max_rows and H % th == 0:
            return th
    return H


# ----------------------------------------------------------------------------
# Banded row->row conv matrix (built once on the host; ~0.1-0.2 MiB here).
#   input  row layout : lane = wi*Cin + ci,  wi in [0, W+2)  (zero width halo)
#   output row layout : lane = (wo+pad)*Cout + co            (pad=1 keeps halo
#                       lanes; their weight columns are all-zero -> halo == 0)
#   contraction layout: k = dy*LIN + wi*Cin + ci   (dy = vertical tap)
# ----------------------------------------------------------------------------
def _banded_conv_matrix(k_hwio, W, out_halo):
    kh, kw, cin, cout = k_hwio.shape                    # (3, 3, Cin, Cout), HWIO
    lin = (W + 2) * cin
    pad_out = 1 if out_halo else 0
    lout = (W + 2 * pad_out) * cout
    dy, dx, wo, ci, co = np.meshgrid(                   # static (numpy) indices
        np.arange(kh), np.arange(kw), np.arange(W),
        np.arange(cin), np.arange(cout), indexing="ij")
    rows = (dy * lin + (wo + dx) * cin + ci).ravel()
    cols = ((wo + pad_out) * cout + co).ravel()
    vals = k_hwio[dy, dx, ci, co].ravel()               # gather with static indices
    wmat = jnp.zeros((kh * lin, lout), jnp.float32)
    return wmat.at[rows, cols].set(vals)


# ----------------------------------------------------------------------------
# Fused conv kernel (one row tile per grid step).
#   stage 1 (normalize_input=False): pre(x) = x + bias_row          (time shift)
#   stage 2 (normalize_input=True) : pre(x) = relu(x*scale + bias)  (BN1+ReLU1)
# then one MXU matmul (TH, 3*LIN) x (3*LIN, LOUT), plus fused per-channel
# sum / sum-of-squares statistics for the following BatchNorm.
# ----------------------------------------------------------------------------
def _make_conv_kernel(TH, normalize_input, emit_halo, mxu_dtype):
    def kernel(*refs):
        if normalize_input:
            x_ref, prev_ref, next_ref, sc_ref, bi_ref, w_ref = refs[:6]
            outs = refs[6:]
        else:
            x_ref, prev_ref, next_ref, bi_ref, w_ref = refs[:5]
            sc_ref = None
            outs = refs[5:]
        if emit_halo:
            z_ref, halo_ref, stats_ref = outs
        else:
            z_ref, stats_ref = outs
            halo_ref = None

        i = pl.program_id(1)
        last = pl.num_programs(1) - 1

        bias = bi_ref[...][0]                            # (1, LIN)
        if normalize_input:
            scale = sc_ref[...][0]                       # (1, LIN)
            pre = lambda rows: jnp.maximum(rows * scale + bias, 0.0)
        else:
            pre = lambda rows: rows + bias

        # row tile + 1-row vertical halo (zeros at the image top/bottom)
        main = pre(x_ref[...][0])                        # (TH, LIN)
        top_raw = prev_ref[...][0, 0][1:2, :]            # prev tile's last row
        bot_raw = next_ref[...][0, 0][0:1, :]            # next tile's first row
        top_mask = (i > 0).astype(jnp.float32)
        bot_mask = (i < last).astype(jnp.float32)
        top = pre(top_raw) * top_mask                    # (1, LIN)
        bot = pre(bot_raw) * bot_mask                    # (1, LIN)

        strip = jnp.concatenate([top, main, bot], axis=0)        # (TH+2, LIN)
        a = jnp.concatenate(                                      # (TH, 3*LIN)
            [strip[0:TH], strip[1:TH + 1], strip[2:TH + 2]], axis=1)

        # single im2col-style matmul; no conv bias (cancels with BN mean)
        acc = jnp.dot(a.astype(mxu_dtype), w_ref[...].astype(mxu_dtype),
                      preferred_element_type=jnp.float32)         # (TH, LOUT)

        z_ref[0] = acc
        if emit_halo:
            # tile's boundary rows -> next stage's vertical halo
            halo_ref[0, 0] = jnp.concatenate([acc[0:1], acc[TH - 1:TH]], axis=0)
        # fused BN statistics (width-halo lanes are exact zeros -> contribute 0)
        stats_ref[0, 0] = jnp.concatenate(
            [jnp.sum(acc, axis=0, keepdims=True),
             jnp.sum(acc * acc, axis=0, keepdims=True)], axis=0)

    return kernel


def _conv_stage(x_lane, x_halo, scale_row, bias_row, wmat, *, tile_rows,
                normalize_input, emit_halo, mxu_dtype):
    N, H, LIN = x_lane.shape
    KDIM, LOUT = wmat.shape
    TH = tile_rows
    nI = H // TH

    x_spec = pl.BlockSpec((1, TH, LIN), lambda n, i: (n, i, 0))
    prev_spec = pl.BlockSpec((1, 1, 2, LIN),
                             lambda n, i: (n, jnp.maximum(i - 1, 0), 0, 0))
    next_spec = pl.BlockSpec((1, 1, 2, LIN),
                             lambda n, i: (n, jnp.minimum(i + 1, nI - 1), 0, 0))
    w_spec = pl.BlockSpec((KDIM, LOUT), lambda n, i: (0, 0))

    def _row_spec(arr):
        if arr.shape[0] == 1:
            return pl.BlockSpec((1, 1, arr.shape[-1]), lambda n, i: (0, 0, 0))
        return pl.BlockSpec((1, 1, arr.shape[-1]), lambda n, i: (n, 0, 0))

    inputs = [x_lane, x_halo, x_halo]
    in_specs = [x_spec, prev_spec, next_spec]
    if normalize_input:
        inputs.append(scale_row)
        in_specs.append(_row_spec(scale_row))
    inputs.append(bias_row)
    in_specs.append(_row_spec(bias_row))
    inputs.append(wmat)
    in_specs.append(w_spec)

    out_shape = [jax.ShapeDtypeStruct((N, H, LOUT), jnp.float32)]
    out_specs = [pl.BlockSpec((1, TH, LOUT), lambda n, i: (n, i, 0))]
    if emit_halo:
        out_shape.append(jax.ShapeDtypeStruct((N, nI, 2, LOUT), jnp.float32))
        out_specs.append(pl.BlockSpec((1, 1, 2, LOUT), lambda n, i: (n, i, 0, 0)))
    out_shape.append(jax.ShapeDtypeStruct((N, nI, 2, LOUT), jnp.float32))
    out_specs.append(pl.BlockSpec((1, 1, 2, LOUT), lambda n, i: (n, i, 0, 0)))

    kernel = _make_conv_kernel(TH, normalize_input, emit_halo, mxu_dtype)
    return pl.pallas_call(
        kernel,
        grid=(N, nI),
        in_specs=in_specs,
        out_specs=tuple(out_specs),
        out_shape=tuple(out_shape),
        compiler_params=_compiler_params(),
    )(*inputs)


# ----------------------------------------------------------------------------
# Final BN2 + ReLU2 (elementwise, lane-dense W*Cout = 128-lane rows).
# ----------------------------------------------------------------------------
def _bn_relu_kernel(z_ref, sc_ref, bi_ref, o_ref):
    o_ref[0] = jnp.maximum(z_ref[...][0] * sc_ref[...][0] + bi_ref[...][0], 0.0)


def _bn_relu_stage(z, scale_row, bias_row, tile_rows):
    N, H, L = z.shape
    TH = tile_rows
    nI = H // TH
    return pl.pallas_call(
        _bn_relu_kernel,
        grid=(N, nI),
        in_specs=[pl.BlockSpec((1, TH, L), lambda n, i: (n, i, 0)),
                  pl.BlockSpec((1, 1, L), lambda n, i: (0, 0, 0)),
                  pl.BlockSpec((1, 1, L), lambda n, i: (0, 0, 0))],
        out_specs=pl.BlockSpec((1, TH, L), lambda n, i: (n, i, 0)),
        out_shape=jax.ShapeDtypeStruct((N, H, L), jnp.float32),
        compiler_params=_compiler_params(),
    )(z, scale_row, bias_row)


# ----------------------------------------------------------------------------
# Tiny plain-JAX glue: reduce the fused stats and build BN scale/bias rows.
# ----------------------------------------------------------------------------
def _finalize_stats(stats, cout, count):
    s = stats.sum(axis=(0, 1))                    # (2, L)
    s = s.reshape(2, -1, cout).sum(axis=1)        # (2, Cout); halo lanes are 0
    mean = s[0] / count
    var = s[1] / count - mean * mean              # E[z^2]-E[z]^2 (fused single pass)
    return mean, jax.lax.rsqrt(var + EPS)


def _bn_rows(mean, rstd, gamma, beta, W, with_halo):
    scale_c = gamma * rstd
    bias_c = beta - mean * scale_c
    cout = scale_c.shape[0]
    sc = jnp.broadcast_to(scale_c[None, :], (W, cout))
    bi = jnp.broadcast_to(bias_c[None, :], (W, cout))
    if with_halo:                                  # zero scale/bias on halo lanes
        sc = jnp.pad(sc, ((1, 1), (0, 0)))
        bi = jnp.pad(bi, ((1, 1), (0, 0)))
    return (sc.reshape(1, 1, -1).astype(jnp.float32),
            bi.reshape(1, 1, -1).astype(jnp.float32))


# ----------------------------------------------------------------------------
# ConvBlock forward.
# ----------------------------------------------------------------------------
def conv_block_forward(x_nchw, v, params, *, tile_rows=None, mxu_dtype=jnp.float32):
    # mxu_dtype=jnp.bfloat16 halves MXU/DMA cost on v6e/v7x; the demo uses f32
    # so the correctness check against the f32 reference stays tight.
    N, Cin, H, W = x_nchw.shape
    Cout = params["cw1"].shape[-1]
    TH = _pick_tile_rows(H) if tile_rows is None else min(tile_rows, H)
    assert H % TH == 0 and (TH % 8 == 0 or TH == H), (H, TH)
    nI = H // TH

    # time-embedding MLP in plain JAX (a standalone pallas_call for a (N,T)x(T,Cin)
    # matmul is pure launch overhead)
    h = jnp.maximum(v @ params["mw1"] + params["mb1"], 0.0)
    shift = h @ params["mw2"] + params["mb2"]                        # (N, Cin)

    # interface glue: NCHW -> lane-dense (N, H, (W+2)*Cin), zero width-halo lanes
    LIN1 = (W + 2) * Cin
    x_nhwc = jnp.transpose(x_nchw, (0, 2, 3, 1))
    xs = jnp.pad(x_nhwc, ((0, 0), (0, 0), (1, 1), (0, 0))).reshape(N, H, LIN1)
    xs_halo = xs.reshape(N, nI, TH, LIN1)[:, :, (0, TH - 1), :]      # (N, nI, 2, LIN1)

    # per-image additive time shift tiled across W, zero on the halo lanes
    bias1 = jnp.pad(jnp.broadcast_to(shift[:, None, :], (N, W, Cin)),
                    ((0, 0), (1, 1), (0, 0))).reshape(N, 1, LIN1)

    # banded conv matrices (conv bias dropped: cancels with train-mode BN mean)
    w1 = _banded_conv_matrix(params["cw1"], W, out_halo=True)    # (3*LIN1, (W+2)*Cout)
    w2 = _banded_conv_matrix(params["cw2"], W, out_halo=False)   # (3*LIN2,  W   *Cout)

    # stage 1: (x + v) -> conv1, fused batch statistics
    z1, z1_halo, stats1 = _conv_stage(
        xs, xs_halo, None, bias1, w1, tile_rows=TH,
        normalize_input=False, emit_halo=True, mxu_dtype=mxu_dtype)
    mean1, rstd1 = _finalize_stats(stats1, Cout, N * H * W)
    sc2, bi2 = _bn_rows(mean1, rstd1, params["g1"], params["be1"], W, with_halo=True)

    # stage 2: BN1+ReLU1 applied on the fly -> conv2, fused batch statistics
    z2, stats2 = _conv_stage(
        z1, z1_halo, sc2, bi2, w2, tile_rows=TH,
        normalize_input=True, emit_halo=False, mxu_dtype=mxu_dtype)
    mean2, rstd2 = _finalize_stats(stats2, Cout, N * H * W)
    sc3, bi3 = _bn_rows(mean2, rstd2, params["g2"], params["be2"], W, with_halo=False)

    # final BN2 + ReLU2, 128-lane-dense output rows
    y = _bn_relu_stage(z2, sc3, bi3, TH)                             # (N, H, W*Cout)
    return jnp.transpose(y.reshape(N, H, W, Cout), (0, 3, 1, 2))     # -> NCHW


# ----------------------------------------------------------------------------
# Pure-JAX reference (mirrors PyTorch: conv WITH bias, train-mode batch stats).
# ----------------------------------------------------------------------------
def conv_block_reference(x_nchw, v, params):
    h = jnp.maximum(v @ params["mw1"] + params["mb1"], 0.0)
    shift = h @ params["mw2"] + params["mb2"]
    x = jnp.transpose(x_nchw, (0, 2, 3, 1)) + shift[:, None, None, :]

    def block(x, k, b, g, be):
        y = jax.lax.conv_general_dilated(
            x, k, window_strides=(1, 1), padding="SAME",
            dimension_numbers=("NHWC", "HWIO", "NHWC")) + b
        mean = jnp.mean(y, axis=(0, 1, 2), keepdims=True)
        var = jnp.mean((y - mean) ** 2, axis=(0, 1, 2), keepdims=True)
        return jnp.maximum((y - mean) * jax.lax.rsqrt(var + EPS) * g + be, 0.0)

    y = block(x, params["cw1"], params["cb1"], params["g1"], params["be1"])
    y = block(y, params["cw2"], params["cb2"], params["g2"], params["be2"])
    return jnp.transpose(y, (0, 3, 1, 2))


if __name__ == "__main__":
    # shapes consistent with ConvBlock(in_ch=4, out_ch=8, time_embed_dim=32)
    N, Cin, Cout, H, W, T = 2, 4, 8, 16, 16, 32

    key = jax.random.PRNGKey(0)
    ks = jax.random.split(key, 14)

    params = {
        # time-embed MLP (stored (in, out); y = v @ W + b == PyTorch's v W^T + b)
        "mw1": 0.1 * jax.random.normal(ks[0], (T, Cin), jnp.float32),
        "mb1": 0.1 * jax.random.normal(ks[1], (Cin,), jnp.float32),
        "mw2": 0.1 * jax.random.normal(ks[2], (Cin, Cin), jnp.float32),
        "mb2": 0.1 * jax.random.normal(ks[3], (Cin,), jnp.float32),
        # conv #1 (HWIO) — cb1 used only by the reference (it cancels under BN)
        "cw1": 0.1 * jax.random.normal(ks[4], (3, 3, Cin, Cout), jnp.float32),
        "cb1": 0.1 * jax.random.normal(ks[5], (Cout,), jnp.float32),
        "g1": 1.0 + 0.1 * jax.random.normal(ks[6], (Cout,), jnp.float32),
        "be1": 0.1 * jax.random.normal(ks[7], (Cout,), jnp.float32),
        # conv #2
        "cw2": 0.1 * jax.random.normal(ks[8], (3, 3, Cout, Cout), jnp.float32),
        "cb2": 0.1 * jax.random.normal(ks[9], (Cout,), jnp.float32),
        "g2": 1.0 + 0.1 * jax.random.normal(ks[10], (Cout,), jnp.float32),
        "be2": 0.1 * jax.random.normal(ks[11], (Cout,), jnp.float32),
    }

    x = jax.random.normal(ks[12], (N, Cin, H, W), jnp.float32)   # NCHW like PyTorch
    v = jax.random.normal(ks[13], (N, T), jnp.float32)

    out = jax.jit(conv_block_forward)(x, v, params)
    out = jax.block_until_ready(out)

    ref = conv_block_reference(x, v, params)
    assert out.shape == (N, Cout, H, W), out.shape
    err = float(jnp.max(jnp.abs(out - ref)))
    assert jnp.allclose(out, ref, atol=2e-4, rtol=2e-4), err

    print("KERNEL_OK")
</pallas_src>

<mosaic_0001>
module attributes {stable_mosaic.version = 11 : i64} {
  func.func @kernel(%arg0: i32, %arg1: i32, %arg2: memref<1x16x72xf32, #tpu.memory_space<vmem>>, %arg3: memref<1x1x2x72xf32, #tpu.memory_space<vmem>>, %arg4: memref<1x1x2x72xf32, #tpu.memory_space<vmem>>, %arg5: memref<1x1x72xf32, #tpu.memory_space<vmem>>, %arg6: memref<216x144xf32, #tpu.memory_space<vmem>>, %arg7: memref<1x16x144xf32, #tpu.memory_space<vmem>>, %arg8: memref<1x1x2x144xf32, #tpu.memory_space<vmem>>, %arg9: memref<1x1x2x144xf32, #tpu.memory_space<vmem>>) attributes {dimension_semantics = [#tpu.dimension_semantics<parallel>, #tpu.dimension_semantics<parallel>], iteration_bounds = array<i64: 2, 1>, scalar_prefetch = 0 : i64, scratch_operands = 0 : i64, tpu.core_type = #tpu.core_type<tc>, window_params = [{transform_indices = @transform_0, window_bounds = array<i64: 1, 16, 72>}, {transform_indices = @transform_1, window_bounds = array<i64: 1, 1, 2, 72>}, {transform_indices = @transform_2, window_bounds = array<i64: 1, 1, 2, 72>}, {transform_indices = @transform_3, window_bounds = array<i64: 1, 1, 72>}, {pipeline_mode = #tpu.pipeline_mode<synchronous>, transform_indices = @transform_4, window_bounds = array<i64: 216, 144>}, {transform_indices = @transform_5, window_bounds = array<i64: 1, 16, 144>}, {transform_indices = @transform_6, window_bounds = array<i64: 1, 1, 2, 144>}, {transform_indices = @transform_7, window_bounds = array<i64: 1, 1, 2, 144>}]} {
    %c0 = arith.constant 0 : index
    %c0_0 = arith.constant 0 : index
    %c0_1 = arith.constant 0 : index
    %0 = vector.load %arg5[%c0, %c0_0, %c0_1] : memref<1x1x72xf32, #tpu.memory_space<vmem>>, vector<1x1x72xf32>
    %1 = vector.shape_cast %0 : vector<1x1x72xf32> to vector<1x72xf32>
    %c0_2 = arith.constant 0 : index
    %c0_3 = arith.constant 0 : index
    %c0_4 = arith.constant 0 : index
    %2 = vector.load %arg2[%c0_2, %c0_3, %c0_4] : memref<1x16x72xf32, #tpu.memory_space<vmem>>, vector<1x16x72xf32>
    %3 = vector.shape_cast %2 : vector<1x16x72xf32> to vector<16x72xf32>
    %4 = vector.broadcast %1 : vector<1x72xf32> to vector<16x72xf32>
    %5 = arith.addf %3, %4 : vector<16x72xf32>
    %c0_5 = arith.constant 0 : index
    %c0_6 = arith.constant 0 : index
    %c0_7 = arith.constant 0 : index
    %c0_8 = arith.constant 0 : index
    %6 = vector.load %arg3[%c0_5, %c0_6, %c0_7, %c0_8] : memref<1x1x2x72xf32, #tpu.memory_space<vmem>>, vector<1x1x2x72xf32>
    %7 = vector.shape_cast %6 : vector<1x1x2x72xf32> to vector<2x72xf32>
    %8 = vector.extract_strided_slice %7 {offsets = [1, 0], sizes = [1, 72], strides = [1, 1]} : vector<2x72xf32> to vector<1x72xf32>
    %c0_9 = arith.constant 0 : index
    %c0_10 = arith.constant 0 : index
    %c0_11 = arith.constant 0 : index
    %c0_12 = arith.constant 0 : index
    %9 = vector.load %arg4[%c0_9, %c0_10, %c0_11, %c0_12] : memref<1x1x2x72xf32, #tpu.memory_space<vmem>>, vector<1x1x2x72xf32>
    %10 = vector.shape_cast %9 : vector<1x1x2x72xf32> to vector<2x72xf32>
    %11 = vector.extract_strided_slice %10 {offsets = [0, 0], sizes = [1, 72], strides = [1, 1]} : vector<2x72xf32> to vector<1x72xf32>
    %c0_i32 = arith.constant 0 : i32
    %12 = arith.cmpi sgt, %arg1, %c0_i32 : i32
    %13 = arith.extui %12 : i1 to i32
    %14 = arith.sitofp %13 : i32 to f32
    %c0_i32_13 = arith.constant 0 : i32
    %15 = arith.cmpi slt, %arg1, %c0_i32_13 : i32
    %16 = arith.extui %15 : i1 to i32
    %17 = arith.sitofp %16 : i32 to f32
    %18 = arith.addf %8, %1 : vector<1x72xf32>
    %19 = vector.broadcast %14 : f32 to vector<1x72xf32>
    %20 = arith.mulf %18, %19 : vector<1x72xf32>
    %21 = arith.addf %11, %1 : vector<1x72xf32>
    %22 = vector.broadcast %17 : f32 to vector<1x72xf32>
    %23 = arith.mulf %21, %22 : vector<1x72xf32>
    %24 = tpu.concatenate %20, %5, %23 in 0 : vector<1x72xf32>, vector<16x72xf32>, vector<1x72xf32> -> vector<18x72xf32>
    %25 = vector.extract_strided_slice %24 {offsets = [0, 0], sizes = [16, 72], strides = [1, 1]} : vector<18x72xf32> to vector<16x72xf32>
    %26 = vector.extract_strided_slice %24 {offsets = [1, 0], sizes = [16, 72], strides = [1, 1]} : vector<18x72xf32> to vector<16x72xf32>
    %27 = vector.extract_strided_slice %24 {offsets = [2, 0], sizes = [16, 72], strides = [1, 1]} : vector<18x72xf32> to vector<16x72xf32>
    %28 = tpu.concatenate %25, %26, %27 in 1 : vector<16x72xf32>, vector<16x72xf32>, vector<16x72xf32> -> vector<16x216xf32>
    %c0_14 = arith.constant 0 : index
    %c0_15 = arith.constant 0 : index
    %29 = vector.load %arg6[%c0_14, %c0_15] : memref<216x144xf32, #tpu.memory_space<vmem>>, vector<216x144xf32>
    %cst = arith.constant dense<0.000000e+00> : vector<16x144xf32>
    %30 = tpu.matmul %28, %29, %cst {dimension_numbers = #tpu.dot_dimension_numbers<[1], [0], [0], [1], [0, 0, 1, 1], [], []>} : vector<16x216xf32>, vector<216x144xf32>, vector<16x144xf32> -> vector<16x144xf32>
    %c0_16 = arith.constant 0 : index
    %c0_17 = arith.constant 0 : index
    %c0_18 = arith.constant 0 : index
    %31 = vector.load %arg7[%c0_16, %c0_17, %c0_18] : memref<1x16x144xf32, #tpu.memory_space<vmem>>, vector<1x16x144xf32>
    %32 = vector.shape_cast %31 : vector<1x16x144xf32> to vector<16x144xf32>
    %33 = vector.shape_cast %30 : vector<16x144xf32> to vector<1x16x144xf32>
    tpu.vector_store %arg7[%c0_16, %c0_17, %c0_18], %33 {strides = array<i32>} : memref<1x16x144xf32, #tpu.memory_space<vmem>>, vector<1x16x144xf32>,
    %34 = vector.extract_strided_slice %30 {offsets = [0, 0], sizes = [1, 144], strides = [1, 1]} : vector<16x144xf32> to vector<1x144xf32>
    %35 = vector.extract_strided_slice %30 {offsets = [15, 0], sizes = [1, 144], strides = [1, 1]} : vector<16x144xf32> to vector<1x144xf32>
    %36 = tpu.concatenate %34, %35 in 0 : vector<1x144xf32>, vector<1x144xf32> -> vector<2x144xf32>
    %c0_19 = arith.constant 0 : index
    %c0_20 = arith.constant 0 : index
    %c0_21 = arith.constant 0 : index
    %c0_22 = arith.constant 0 : index
    %37 = vector.load %arg8[%c0_19, %c0_20, %c0_21, %c0_22] : memref<1x1x2x144xf32, #tpu.memory_space<vmem>>, vector<1x1x2x144xf32>
    %38 = vector.shape_cast %37 : vector<1x1x2x144xf32> to vector<2x144xf32>
    %39 = vector.shape_cast %36 : vector<2x144xf32> to vector<1x1x2x144xf32>
    tpu.vector_store %arg8[%c0_19, %c0_20, %c0_21, %c0_22], %39 {strides = array<i32>} : memref<1x1x2x144xf32, #tpu.memory_space<vmem>>, vector<1x1x2x144xf32>,
    %cst_23 = arith.constant dense<0.000000e+00> : vector<144xf32>
    %40 = vector.multi_reduction <add>, %30, %cst_23 [0] : vector<16x144xf32> to vector<144xf32>
    %41 = vector.shape_cast %40 : vector<144xf32> to vector<1x144xf32>
    %42 = arith.mulf %30, %30 : vector<16x144xf32>
    %cst_24 = arith.constant dense<0.000000e+00> : vector<144xf32>
    %43 = vector.multi_reduction <add>, %42, %cst_24 [0] : vector<16x144xf32> to vector<144xf32>
    %44 = vector.shape_cast %43 : vector<144xf32> to vector<1x144xf32>
    %45 = tpu.concatenate %41, %44 in 0 : vector<1x144xf32>, vector<1x144xf32> -> vector<2x144xf32>
    %c0_25 = arith.constant 0 : index
    %c0_26 = arith.constant 0 : index
    %c0_27 = arith.constant 0 : index
    %c0_28 = arith.constant 0 : index
    %46 = vector.load %arg9[%c0_25, %c0_26, %c0_27, %c0_28] : memref<1x1x2x144xf32, #tpu.memory_space<vmem>>, vector<1x1x2x144xf32>
    %47 = vector.shape_cast %46 : vector<1x1x2x144xf32> to vector<2x144xf32>
    %48 = vector.shape_cast %45 : vector<2x144xf32> to vector<1x1x2x144xf32>
    tpu.vector_store %arg9[%c0_25, %c0_26, %c0_27, %c0_28], %48 {strides = array<i32>} : memref<1x1x2x144xf32, #tpu.memory_space<vmem>>, vector<1x1x2x144xf32>,
    return
  }
  func.func @transform_0(%arg0: i32, %arg1: i32) -> (i32, i32, i32) {
    %c0_i32 = arith.constant 0 : i32
    %c0_i32_0 = arith.constant 0 : i32
    return %arg0, %arg1, %c0_i32 : i32, i32, i32
  }
  func.func @transform_1(%arg0: i32, %arg1: i32) -> (i32, i32, i32, i32) {
    %c1_i32 = arith.constant 1 : i32
    %0 = arith.subi %arg1, %c1_i32 : i32
    %c0_i32 = arith.constant 0 : i32
    %1 = arith.maxsi %0, %c0_i32 : i32
    %c0_i32_0 = arith.constant 0 : i32
    %c0_i32_1 = arith.constant 0 : i32
    %c0_i32_2 = arith.constant 0 : i32
    return %arg0, %1, %c0_i32_0, %c0_i32_1 : i32, i32, i32, i32
  }
  func.func @transform_2(%arg0: i32, %arg1: i32) -> (i32, i32, i32, i32) {
    %c1_i32 = arith.constant 1 : i32
    %0 = arith.addi %arg1, %c1_i32 : i32
    %c0_i32 = arith.constant 0 : i32
    %1 = arith.minsi %0, %c0_i32 : i32
    %c0_i32_0 = arith.constant 0 : i32
    %c0_i32_1 = arith.constant 0 : i32
    %c0_i32_2 = arith.constant 0 : i32
    return %arg0, %1, %c0_i32_0, %c0_i32_1 : i32, i32, i32, i32
  }
  func.func @transform_3(%arg0: i32, %arg1: i32) -> (i32, i32, i32) {
    %c0_i32 = arith.constant 0 : i32
    %c0_i32_0 = arith.constant 0 : i32
    %c0_i32_1 = arith.constant 0 : i32
    return %arg0, %c0_i32, %c0_i32_0 : i32, i32, i32
  }
  func.func @transform_4(%arg0: i32, %arg1: i32) -> (i32, i32) {
    %c0_i32 = arith.constant 0 : i32
    %c0_i32_0 = arith.constant 0 : i32
    %c0_i32_1 = arith.constant 0 : i32
    return %c0_i32, %c0_i32_0 : i32, i32
  }
  func.func @transform_5(%arg0: i32, %arg1: i32) -> (i32, i32, i32) {
    %c0_i32 = arith.constant 0 : i32
    %c0_i32_0 = arith.constant 0 : i32
    return %arg0, %arg1, %c0_i32 : i32, i32, i32
  }
  func.func @transform_6(%arg0: i32, %arg1: i32) -> (i32, i32, i32, i32) {
    %c0_i32 = arith.constant 0 : i32
    %c0_i32_0 = arith.constant 0 : i32
    %c0_i32_1 = arith.constant 0 : i32
    return %arg0, %arg1, %c0_i32, %c0_i32_0 : i32, i32, i32, i32
  }
  func.func @transform_7(%arg0: i32, %arg1: i32) -> (i32, i32, i32, i32) {
    %c0_i32 = arith.constant 0 : i32
    %c0_i32_0 = arith.constant 0 : i32
    %c0_i32_1 = arith.constant 0 : i32
    return %arg0, %arg1, %c0_i32, %c0_i32_0 : i32, i32, i32, i32
  }
}

module attributes {stable_mosaic.version = 11 : i64} {
  func.func @kernel(%arg0: i32, %arg1: i32, %arg2: memref<1x16x144xf32, #tpu.memory_space<vmem>>, %arg3: memref<1x1x2x144xf32, #tpu.memory_space<vmem>>, %arg4: memref<1x1x2x144xf32, #tpu.memory_space<vmem>>, %arg5: memref<1x1x144xf32, #tpu.memory_space<vmem>>, %arg6: memref<1x1x144xf32, #tpu.memory_space<vmem>>, %arg7: memref<432x128xf32, #tpu.memory_space<vmem>>, %arg8: memref<1x16x128xf32, #tpu.memory_space<vmem>>, %arg9: memref<1x1x2x128xf32, #tpu.memory_space<vmem>>) attributes {dimension_semantics = [#tpu.dimension_semantics<parallel>, #tpu.dimension_semantics<parallel>], iteration_bounds = array<i64: 2, 1>, scalar_prefetch = 0 : i64, scratch_operands = 0 : i64, tpu.core_type = #tpu.core_type<tc>, window_params = [{transform_indices = @transform_0, window_bounds = array<i64: 1, 16, 144>}, {transform_indices = @transform_1, window_bounds = array<i64: 1, 1, 2, 144>}, {transform_indices = @transform_2, window_bounds = array<i64: 1, 1, 2, 144>}, {pipeline_mode = #tpu.pipeline_mode<synchronous>, transform_indices = @transform_3, window_bounds = array<i64: 1, 1, 144>}, {pipeline_mode = #tpu.pipeline_mode<synchronous>, transform_indices = @transform_4, window_bounds = array<i64: 1, 1, 144>}, {pipeline_mode = #tpu.pipeline_mode<synchronous>, transform_indices = @transform_5, window_bounds = array<i64: 432, 128>}, {transform_indices = @transform_6, window_bounds = array<i64: 1, 16, 128>}, {transform_indices = @transform_7, window_bounds = array<i64: 1, 1, 2, 128>}]} {
    %c0 = arith.constant 0 : index
    %c0_0 = arith.constant 0 : index
    %c0_1 = arith.constant 0 : index
    %0 = vector.load %arg6[%c0, %c0_0, %c0_1] : memref<1x1x144xf32, #tpu.memory_space<vmem>>, vector<1x1x144xf32>
    %1 = vector.shape_cast %0 : vector<1x1x144xf32> to vector<1x144xf32>
    %c0_2 = arith.constant 0 : index
    %c0_3 = arith.constant 0 : index
    %c0_4 = arith.constant 0 : index
    %2 = vector.load %arg5[%c0_2, %c0_3, %c0_4] : memref<1x1x144xf32, #tpu.memory_space<vmem>>, vector<1x1x144xf32>
    %3 = vector.shape_cast %2 : vector<1x1x144xf32> to vector<1x144xf32>
    %c0_5 = arith.constant 0 : index
    %c0_6 = arith.constant 0 : index
    %c0_7 = arith.constant 0 : index
    %4 = vector.load %arg2[%c0_5, %c0_6, %c0_7] : memref<1x16x144xf32, #tpu.memory_space<vmem>>, vector<1x16x144xf32>
    %5 = vector.shape_cast %4 : vector<1x16x144xf32> to vector<16x144xf32>
    %6 = vector.broadcast %3 : vector<1x144xf32> to vector<16x144xf32>
    %7 = arith.mulf %5, %6 : vector<16x144xf32>
    %8 = vector.broadcast %1 : vector<1x144xf32> to vector<16x144xf32>
    %9 = arith.addf %7, %8 : vector<16x144xf32>
    %cst = arith.constant 0.000000e+00 : f32
    %10 = vector.broadcast %cst : f32 to vector<16x144xf32>
    %11 = arith.maximumf %9, %10 : vector<16x144xf32>
    %c0_8 = arith.constant 0 : index
    %c0_9 = arith.constant 0 : index
    %c0_10 = arith.constant 0 : index
    %c0_11 = arith.constant 0 : index
    %12 = vector.load %arg3[%c0_8, %c0_9, %c0_10, %c0_11] : memref<1x1x2x144xf32, #tpu.memory_space<vmem>>, vector<1x1x2x144xf32>
    %13 = vector.shape_cast %12 : vector<1x1x2x144xf32> to vector<2x144xf32>
    %14 = vector.extract_strided_slice %13 {offsets = [1, 0], sizes = [1, 144], strides = [1, 1]} : vector<2x144xf32> to vector<1x144xf32>
    %c0_12 = arith.constant 0 : index
    %c0_13 = arith.constant 0 : index
    %c0_14 = arith.constant 0 : index
    %c0_15 = arith.constant 0 : index
    %15 = vector.load %arg4[%c0_12, %c0_13, %c0_14, %c0_15] : memref<1x1x2x144xf32, #tpu.memory_space<vmem>>, vector<1x1x2x144xf32>
    %16 = vector.shape_cast %15 : vector<1x1x2x144xf32> to vector<2x144xf32>
    %17 = vector.extract_strided_slice %16 {offsets = [0, 0], sizes = [1, 144], strides = [1, 1]} : vector<2x144xf32> to vector<1x144xf32>
    %c0_i32 = arith.constant 0 : i32
    %18 = arith.cmpi sgt, %arg1, %c0_i32 : i32
    %19 = arith.extui %18 : i1 to i32
    %20 = arith.sitofp %19 : i32 to f32
    %c0_i32_16 = arith.constant 0 : i32
    %21 = arith.cmpi slt, %arg1, %c0_i32_16 : i32
    %22 = arith.extui %21 : i1 to i32
    %23 = arith.sitofp %22 : i32 to f32
    %24 = arith.mulf %14, %3 : vector<1x144xf32>
    %25 = arith.addf %24, %1 : vector<1x144xf32>
    %cst_17 = arith.constant 0.000000e+00 : f32
    %26 = vector.broadcast %cst_17 : f32 to vector<1x144xf32>
    %27 = arith.maximumf %25, %26 : vector<1x144xf32>
    %28 = vector.broadcast %20 : f32 to vector<1x144xf32>
    %29 = arith.mulf %27, %28 : vector<1x144xf32>
    %30 = arith.mulf %17, %3 : vector<1x144xf32>
    %31 = arith.addf %30, %1 : vector<1x144xf32>
    %cst_18 = arith.constant 0.000000e+00 : f32
    %32 = vector.broadcast %cst_18 : f32 to vector<1x144xf32>
    %33 = arith.maximumf %31, %32 : vector<1x144xf32>
    %34 = vector.broadcast %23 : f32 to vector<1x144xf32>
    %35 = arith.mulf %33, %34 : vector<1x144xf32>
    %36 = tpu.concatenate %29, %11, %35 in 0 : vector<1x144xf32>, vector<16x144xf32>, vector<1x144xf32> -> vector<18x144xf32>
    %37 = vector.extract_strided_slice %36 {offsets = [0, 0], sizes = [16, 144], strides = [1, 1]} : vector<18x144xf32> to vector<16x144xf32>
    %38 = vector.extract_strided_slice %36 {offsets = [1, 0], sizes = [16, 144], strides = [1, 1]} : vector<18x144xf32> to vector<16x144xf32>
    %39 = vector.extract_strided_slice %36 {offsets = [2, 0], sizes = [16, 144], strides = [1, 1]} : vector<18x144xf32> to vector<16x144xf32>
    %40 = tpu.concatenate %37, %38, %39 in 1 : vector<16x144xf32>, vector<16x144xf32>, vector<16x144xf32> -> vector<16x432xf32>
    %c0_19 = arith.constant 0 : index
    %c0_20 = arith.constant 0 : index
    %41 = vector.load %arg7[%c0_19, %c0_20] : memref<432x128xf32, #tpu.memory_space<vmem>>, vector<432x128xf32>
    %cst_21 = arith.constant dense<0.000000e+00> : vector<16x128xf32>
    %42 = tpu.matmul %40, %41, %cst_21 {dimension_numbers = #tpu.dot_dimension_numbers<[1], [0], [0], [1], [0, 0, 1, 1], [], []>} : vector<16x432xf32>, vector<432x128xf32>, vector<16x128xf32> -> vector<16x128xf32>
    %c0_22 = arith.constant 0 : index
    %c0_23 = arith.constant 0 : index
    %c0_24 = arith.constant 0 : index
    %43 = vector.load %arg8[%c0_22, %c0_23, %c0_24] : memref<1x16x128xf32, #tpu.memory_space<vmem>>, vector<1x16x128xf32>
    %44 = vector.shape_cast %43 : vector<1x16x128xf32> to vector<16x128xf32>
    %45 = vector.shape_cast %42 : vector<16x128xf32> to vector<1x16x128xf32>
    tpu.vector_store %arg8[%c0_22, %c0_23, %c0_24], %45 {strides = array<i32>} : memref<1x16x128xf32, #tpu.memory_space<vmem>>, vector<1x16x128xf32>,
    %cst_25 = arith.constant dense<0.000000e+00> : vector<128xf32>
    %46 = vector.multi_reduction <add>, %42, %cst_25 [0] : vector<16x128xf32> to vector<128xf32>
    %47 = vector.shape_cast %46 : vector<128xf32> to vector<1x128xf32>
    %48 = arith.mulf %42, %42 : vector<16x128xf32>
    %cst_26 = arith.constant dense<0.000000e+00> : vector<128xf32>
    %49 = vector.multi_reduction <add>, %48, %cst_26 [0] : vector<16x128xf32> to vector<128xf32>
    %50 = vector.shape_cast %49 : vector<128xf32> to vector<1x128xf32>
    %51 = tpu.concatenate %47, %50 in 0 : vector<1x128xf32>, vector<1x128xf32> -> vector<2x128xf32>
    %c0_27 = arith.constant 0 : index
    %c0_28 = arith.constant 0 : index
    %c0_29 = arith.constant 0 : index
    %c0_30 = arith.constant 0 : index
    %52 = vector.load %arg9[%c0_27, %c0_28, %c0_29, %c0_30] : memref<1x1x2x128xf32, #tpu.memory_space<vmem>>, vector<1x1x2x128xf32>
    %53 = vector.shape_cast %52 : vector<1x1x2x128xf32> to vector<2x128xf32>
    %54 = vector.shape_cast %51 : vector<2x128xf32> to vector<1x1x2x128xf32>
    tpu.vector_store %arg9[%c0_27, %c0_28, %c0_29, %c0_30], %54 {strides = array<i32>} : memref<1x1x2x128xf32, #tpu.memory_space<vmem>>, vector<1x1x2x128xf32>,
    return
  }
  func.func @transform_0(%arg0: i32, %arg1: i32) -> (i32, i32, i32) {
    %c0_i32 = arith.constant 0 : i32
    %c0_i32_0 = arith.constant 0 : i32
    return %arg0, %arg1, %c0_i32 : i32, i32, i32
  }
  func.func @transform_1(%arg0: i32, %arg1: i32) -> (i32, i32, i32, i32) {
    %c1_i32 = arith.constant 1 : i32
    %0 = arith.subi %arg1, %c1_i32 : i32
    %c0_i32 = arith.constant 0 : i32
    %1 = arith.maxsi %0, %c0_i32 : i32
    %c0_i32_0 = arith.constant 0 : i32
    %c0_i32_1 = arith.constant 0 : i32
    %c0_i32_2 = arith.constant 0 : i32
    return %arg0, %1, %c0_i32_0, %c0_i32_1 : i32, i32, i32, i32
  }
  func.func @transform_2(%arg0: i32, %arg1: i32) -> (i32, i32, i32, i32) {
    %c1_i32 = arith.constant 1 : i32
    %0 = arith.addi %arg1, %c1_i32 : i32
    %c0_i32 = arith.constant 0 : i32
    %1 = arith.minsi %0, %c0_i32 : i32
    %c0_i32_0 = arith.constant 0 : i32
    %c0_i32_1 = arith.constant 0 : i32
    %c0_i32_2 = arith.constant 0 : i32
    return %arg0, %1, %c0_i32_0, %c0_i32_1 : i32, i32, i32, i32
  }
  func.func @transform_3(%arg0: i32, %arg1: i32) -> (i32, i32, i32) {
    %c0_i32 = arith.constant 0 : i32
    %c0_i32_0 = arith.constant 0 : i32
    %c0_i32_1 = arith.constant 0 : i32
    %c0_i32_2 = arith.constant 0 : i32
    return %c0_i32, %c0_i32_0, %c0_i32_1 : i32, i32, i32
  }
  func.func @transform_4(%arg0: i32, %arg1: i32) -> (i32, i32, i32) {
    %c0_i32 = arith.constant 0 : i32
    %c0_i32_0 = arith.constant 0 : i32
    %c0_i32_1 = arith.constant 0 : i32
    %c0_i32_2 = arith.constant 0 : i32
    return %c0_i32, %c0_i32_0, %c0_i32_1 : i32, i32, i32
  }
  func.func @transform_5(%arg0: i32, %arg1: i32) -> (i32, i32) {
    %c0_i32 = arith.constant 0 : i32
    %c0_i32_0 = arith.constant 0 : i32
    %c0_i32_1 = arith.constant 0 : i32
    return %c0_i32, %c0_i32_0 : i32, i32
  }
  func.func @transform_6(%arg0: i32, %arg1: i32) -> (i32, i32, i32) {
    %c0_i32 = arith.constant 0 : i32
    %c0_i32_0 = arith.constant 0 : i32
    return %arg0, %arg1, %c0_i32 : i32, i32, i32
  }
  func.func @transform_7(%arg0: i32, %arg1: i32) -> (i32, i32, i32, i32) {
    %c0_i32 = arith.constant 0 : i32
    %c0_i32_0 = arith.constant 0 : i32
    %c0_i32_1 = arith.constant 0 : i32
    return %arg0, %arg1, %c0_i32, %c0_i32_0 : i32, i32, i32, i32
  }
}

module attributes {stable_mosaic.version = 11 : i64} {
  func.func @_bn_relu_kernel(%arg0: i32, %arg1: i32, %arg2: memref<1x16x128xf32, #tpu.memory_space<vmem>>, %arg3: memref<1x1x128xf32, #tpu.memory_space<vmem>>, %arg4: memref<1x1x128xf32, #tpu.memory_space<vmem>>, %arg5: memref<1x16x128xf32, #tpu.memory_space<vmem>>) attributes {dimension_semantics = [#tpu.dimension_semantics<parallel>, #tpu.dimension_semantics<parallel>], iteration_bounds = array<i64: 2, 1>, scalar_prefetch = 0 : i64, scratch_operands = 0 : i64, tpu.core_type = #tpu.core_type<tc>, window_params = [{transform_indices = @transform_0, window_bounds = array<i64: 1, 16, 128>}, {pipeline_mode = #tpu.pipeline_mode<synchronous>, transform_indices = @transform_1, window_bounds = array<i64: 1, 1, 128>}, {pipeline_mode = #tpu.pipeline_mode<synchronous>, transform_indices = @transform_2, window_bounds = array<i64: 1, 1, 128>}, {transform_indices = @transform_3, window_bounds = array<i64: 1, 16, 128>}]} {
    %c0 = arith.constant 0 : index
    %c0_0 = arith.constant 0 : index
    %c0_1 = arith.constant 0 : index
    %0 = vector.load %arg2[%c0, %c0_0, %c0_1] : memref<1x16x128xf32, #tpu.memory_space<vmem>>, vector<1x16x128xf32>
    %1 = vector.shape_cast %0 : vector<1x16x128xf32> to vector<16x128xf32>
    %c0_2 = arith.constant 0 : index
    %c0_3 = arith.constant 0 : index
    %c0_4 = arith.constant 0 : index
    %2 = vector.load %arg3[%c0_2, %c0_3, %c0_4] : memref<1x1x128xf32, #tpu.memory_space<vmem>>, vector<1x1x128xf32>
    %3 = vector.shape_cast %2 : vector<1x1x128xf32> to vector<1x128xf32>
    %4 = vector.broadcast %3 : vector<1x128xf32> to vector<16x128xf32>
    %5 = arith.mulf %1, %4 : vector<16x128xf32>
    %c0_5 = arith.constant 0 : index
    %c0_6 = arith.constant 0 : index
    %c0_7 = arith.constant 0 : index
    %6 = vector.load %arg4[%c0_5, %c0_6, %c0_7] : memref<1x1x128xf32, #tpu.memory_space<vmem>>, vector<1x1x128xf32>
    %7 = vector.shape_cast %6 : vector<1x1x128xf32> to vector<1x128xf32>
    %8 = vector.broadcast %7 : vector<1x128xf32> to vector<16x128xf32>
    %9 = arith.addf %5, %8 : vector<16x128xf32>
    %cst = arith.constant 0.000000e+00 : f32
    %10 = vector.broadcast %cst : f32 to vector<16x128xf32>
    %11 = arith.maximumf %9, %10 : vector<16x128xf32>
    %c0_8 = arith.constant 0 : index
    %c0_9 = arith.constant 0 : index
    %c0_10 = arith.constant 0 : index
    %12 = vector.load %arg5[%c0_8, %c0_9, %c0_10] : memref<1x16x128xf32, #tpu.memory_space<vmem>>, vector<1x16x128xf32>
    %13 = vector.shape_cast %12 : vector<1x16x128xf32> to vector<16x128xf32>
    %14 = vector.shape_cast %11 : vector<16x128xf32> to vector<1x16x128xf32>
    tpu.vector_store %arg5[%c0_8, %c0_9, %c0_10], %14 {strides = array<i32>} : memref<1x16x128xf32, #tpu.memory_space<vmem>>, vector<1x16x128xf32>,
    return
  }
  func.func @transform_0(%arg0: i32, %arg1: i32) -> (i32, i32, i32) {
    %c0_i32 = arith.constant 0 : i32
    %c0_i32_0 = arith.constant 0 : i32
    return %arg0, %arg1, %c0_i32 : i32, i32, i32
  }
  func.func @transform_1(%arg0: i32, %arg1: i32) -> (i32, i32, i32) {
    %c0_i32 = arith.constant 0 : i32
    %c0_i32_0 = arith.constant 0 : i32
    %c0_i32_1 = arith.constant 0 : i32
    %c0_i32_2 = arith.constant 0 : i32
    return %c0_i32, %c0_i32_0, %c0_i32_1 : i32, i32, i32
  }
  func.func @transform_2(%arg0: i32, %arg1: i32) -> (i32, i32, i32) {
    %c0_i32 = arith.constant 0 : i32
    %c0_i32_0 = arith.constant 0 : i32
    %c0_i32_1 = arith.constant 0 : i32
    %c0_i32_2 = arith.constant 0 : i32
    return %c0_i32, %c0_i32_0, %c0_i32_1 : i32, i32, i32
  }
  func.func @transform_3(%arg0: i32, %arg1: i32) -> (i32, i32, i32) {
    %c0_i32 = arith.constant 0 : i32
    %c0_i32_0 = arith.constant 0 : i32
    return %arg0, %arg1, %c0_i32 : i32, i32, i32
  }
}

</mosaic_0001>

<llo_original>
// kernel: conv_block_forward.3
$region0: #{conv_block_forward.3}
  #allocation0 [shape = 'u32[]', space=smem, size = 0x4, offset = 0x4, fixed_abs, tag = 'smem constant byte address 0x4 - core index']
  #allocation1 [shape = 'u32[72,128]{1,0:T(1,128)}', space=vmem, size = 0x9000, scoped, tag = 'internal scratch']
  %s0 = inlined_call_operand.vmem [shape: f32[2,16,72], index: 0, kind: input, shape index: {}]
  %s1 = inlined_call_operand.vmem [shape: f32[2,1,2,72], index: 1, kind: input, shape index: {}, may-alias: {1,2}]
  %s2 = inlined_call_operand.vmem [shape: f32[2,1,2,72], index: 2, kind: input, shape index: {}, may-alias: {1,2}]
  %s3 = inlined_call_operand.vmem [shape: f32[2,1,72], index: 3, kind: input, shape index: {}]
  %s4 = inlined_call_operand.vmem [shape: f32[216,144], index: 4, kind: input, shape index: {}]
  %s5 = inlined_call_operand.vmem [shape: f32[2,16,144], index: 5, kind: output, shape index: {0}]
  %s6 = inlined_call_operand.vmem [shape: f32[2,1,2,144], index: 6, kind: output, shape index: {1}]
  %s7 = inlined_call_operand.vmem [shape: f32[2,1,2,144], index: 7, kind: output, shape index: {2}]
  %8 = xla_tuple %s5, %s6, %s7
  %s9 = sld [smem:[#allocation0]]
  $region69: #{conv_block_forward.3} parent=0
    _
  %s11 = ssub.s32 1, %s9
  %s12 = scalar_select 0, %s11, %s9
  loop: start=0, step=1, limit=4
  $region2: #{conv_block_forward.3} parent=0 // loop_pre_header
    _
  $region3: #{conv_block_forward.3} parent=0 // loop_header
    %s14 = sphi 0, %s18
    %p15 = scmp.ge.s32.totalorder %s14, 4
    %s21 = sphi 0, %s33
    %s22 = sphi 0, %s29
    %s23 = sphi 0, %s21
    %s24 = sphi 0, %s22
    %s25 = sphi 0, %s23
    %s26 = sphi 0, %s24
    %s38 = sphi 0, %s40
    %s41 = sphi 0, %s38
    %s42 = sphi 0, %s41
    %s58 = sphi 0, %s42
    %s72 = sphi 0, %s74
    %s75 = sphi 0, %s72
    %s76 = sphi 0, %s75
    %s92 = sphi 0, %s76
    %s106 = sphi 0, %s108
    %s109 = sphi 0, %s106
    %s110 = sphi 0, %s109
    %s126 = sphi 0, %s110
    %s132 = sphi 0, %s134
    %s135 = sphi 0, %s132
    %s136 = sphi 0, %s135
    %s152 = sphi 0, %s136
    %s156 = sphi 0, %s156
    %s158 = sphi 0, %s156
    %s159 = sphi 0, %s158
    %s173 = sphi 0, %s159
    %s181 = sphi 0, %s183
    %s184 = sphi 0, %s181
    %s185 = sphi 0, %s184
    %s201 = sphi 0, %s185
    %s209 = sphi 0, %s211
    %s212 = sphi 0, %s209
    %s213 = sphi 0, %s212
    %s229 = sphi 0, %s213
    %s237 = sphi 0, %s239
    %s240 = sphi 0, %s237
    %s241 = sphi 0, %s240
    %s257 = sphi 0, %s241
  $region4: #{conv_block_forward.3} parent=0 // loop_header_branch
    %17 = sbr.rel (%p15) target = $region8
  $region5: #{conv_block_forward.3} parent=0 // loop_body
    %s19 = ssub.s32 %s14, 1
    %s20 = ssub.s32 %s14, 2
    %s27 = sadd.s32 1, %s22
    %p28 = scmp.ge.s32.totalorder %s27, 1
    %s29 = scalar_select %p28, 0, %s27
    %s30 = sadd.s32 1, %s21
    %s31 = scalar_select %p28, %s30, %s21
    %p32 = scmp.ge.s32.totalorder %s31, 2
    %s33 = scalar_select %p32, 0, %s31
    %s34 = ssub.s32 %s21, %s33
    %s35 = ssub.s32 %s22, %s29
    %s36 = sor.u32 %s34, %s35
    %p37 = scmp.eq.s32.totalorder %s36, 0
    %s39 = sadd.s32 %s38, 1
    %s40 = scalar_select %p37, %s38, %s39
    %p43 = pneg %p37
    %p44 = scmp.eq.s32.totalorder %s14, 1
    %p45 = por %p43, %p44
    %p46 = scmp.ne.s32.totalorder %s38, %s41
    %p47 = scmp.eq.s32.totalorder %s14, 0
    %p48 = por %p46, %p47
    %p49 = scmp.ne.s32.totalorder %s38, %s41
    %p50 = scmp.eq.s32.totalorder %s19, 1
    %p51 = por %p49, %p50
    %p52 = scmp.ne.s32.totalorder %s41, %s42
    %p53 = scmp.eq.s32.totalorder %s19, 0
    %p54 = por %p52, %p53
    %p55 = scmp.ne.s32.totalorder %s41, %s42
    %p56 = scmp.eq.s32.totalorder %s20, 1
    %p57 = por %p55, %p56
    %p59 = scmp.ne.s32.totalorder %s42, %s58
    %p60 = scmp.eq.s32.totalorder %s20, 0
    %p61 = por %p59, %p60
    %s62 = ssub.s32 %s22, 1
    %p63 = scmp.gt.s32.totalorder %s62, 0
    %s64 = scalar_select %p63, %s62, 0
    %s65 = ssub.s32 %s29, 1
    %p66 = scmp.gt.s32.totalorder %s65, 0
    %s67 = scalar_select %p66, %s65, 0
    %s68 = ssub.s32 %s21, %s33
    %s69 = ssub.s32 %s64, %s67
    %s70 = sor.u32 %s68, %s69
    %p71 = scmp.eq.s32.totalorder %s70, 0
    %s73 = sadd.s32 %s72, 1
    %s74 = scalar_select %p71, %s72, %s73
    %p77 = pneg %p71
    %p78 = scmp.eq.s32.totalorder %s14, 1
    %p79 = por %p77, %p78
    %p80 = scmp.ne.s32.totalorder %s72, %s75
    %p81 = scmp.eq.s32.totalorder %s14, 0
    %p82 = por %p80, %p81
    %p83 = scmp.ne.s32.totalorder %s72, %s75
    %p84 = scmp.eq.s32.totalorder %s19, 1
    %p85 = por %p83, %p84
    %p86 = scmp.ne.s32.totalorder %s75, %s76
    %p87 = scmp.eq.s32.totalorder %s19, 0
    %p88 = por %p86, %p87
    %p89 = scmp.ne.s32.totalorder %s75, %s76
    %p90 = scmp.eq.s32.totalorder %s20, 1
    %p91 = por %p89, %p90
    %p93 = scmp.ne.s32.totalorder %s76, %s92
    %p94 = scmp.eq.s32.totalorder %s20, 0
    %p95 = por %p93, %p94
    %s96 = sadd.s32 %s22, 1
    %p97 = scmp.lt.s32.totalorder %s96, 0
    %s98 = scalar_select %p97, %s96, 0
    %s99 = sadd.s32 %s29, 1
    %p100 = scmp.lt.s32.totalorder %s99, 0
    %s101 = scalar_select %p100, %s99, 0
    %s102 = ssub.s32 %s21, %s33
    %s103 = ssub.s32 %s98, %s101
    %s104 = sor.u32 %s102, %s103
    %p105 = scmp.eq.s32.totalorder %s104, 0
    %s107 = sadd.s32 %s106, 1
    %s108 = scalar_select %p105, %s106, %s107
    %p111 = pneg %p105
    %p112 = scmp.eq.s32.totalorder %s14, 1
    %p113 = por %p111, %p112
    %p114 = scmp.ne.s32.totalorder %s106, %s109
    %p115 = scmp.eq.s32.totalorder %s14, 0
    %p116 = por %p114, %p115
    %p117 = scmp.ne.s32.totalorder %s106, %s109
    %p118 = scmp.eq.s32.totalorder %s19, 1
    %p119 = por %p117, %p118
    %p120 = scmp.ne.s32.totalorder %s109, %s110
    %p121 = scmp.eq.s32.totalorder %s19, 0
    %p122 = por %p120, %p121
    %p123 = scmp.ne.s32.totalorder %s109, %s110
    %p124 = scmp.eq.s32.totalorder %s20, 1
    %p125 = por %p123, %p124
    %p127 = scmp.ne.s32.totalorder %s110, %s126
    %p128 = scmp.eq.s32.totalorder %s20, 0
    %p129 = por %p127, %p128
    %s130 = ssub.s32 %s21, %s33
    %p131 = scmp.eq.s32.totalorder %s130, 0
    %s133 = sadd.s32 %s132, 1
    %s134 = scalar_select %p131, %s132, %s133
    %p137 = pneg %p131
    %p138 = scmp.eq.s32.totalorder %s14, 1
    %p139 = por %p137, %p138
    %p140 = scmp.ne.s32.totalorder %s132, %s135
    %p141 = scmp.eq.s32.totalorder %s14, 0
    %p142 = por %p140, %p141
    %p143 = scmp.ne.s32.totalorder %s132, %s135
    %p144 = scmp.eq.s32.totalorder %s19, 1
    %p145 = por %p143, %p144
    %p146 = scmp.ne.s32.totalorder %s135, %s136
    %p147 = scmp.eq.s32.totalorder %s19, 0
    %p148 = por %p146, %p147
    %p149 = scmp.ne.s32.totalorder %s135, %s136
    %p150 = scmp.eq.s32.totalorder %s20, 1
    %p151 = por %p149, %p150
    %p153 = scmp.ne.s32.totalorder %s136, %s152
    %p154 = scmp.eq.s32.totalorder %s20, 0
    %p155 = por %p153, %p154
    %s157 = sadd.s32 %s156, 1
    %p160 = scmp.eq.s32.totalorder %s14, 1
    %p161 = scmp.ne.s32.totalorder %s156, %s158
    %p162 = scmp.eq.s32.totalorder %s14, 0
    %p163 = por %p161, %p162
    %p164 = scmp.ne.s32.totalorder %s156, %s158
    %p165 = scmp.eq.s32.totalorder %s19, 1
    %p166 = por %p164, %p165
    %p167 = scmp.ne.s32.totalorder %s158, %s159
    %p168 = scmp.eq.s32.totalorder %s19, 0
    %p169 = por %p167, %p168
    %p170 = scmp.ne.s32.totalorder %s158, %s159
    %p171 = scmp.eq.s32.totalorder %s20, 1
    %p172 = por %p170, %p171
    %p174 = scmp.ne.s32.totalorder %s159, %s173
    %p175 = scmp.eq.s32.totalorder %s20, 0
    %p176 = por %p174, %p175
    %s177 = ssub.s32 %s21, %s33
    %s178 = ssub.s32 %s22, %s29
    %s179 = sor.u32 %s177, %s178
    %p180 = scmp.eq.s32.totalorder %s179, 0
    %s182 = sadd.s32 %s181, 1
    %s183 = scalar_select %p180, %s181, %s182
    %p186 = pneg %p180
    %p187 = scmp.eq.s32.totalorder %s14, 1
    %p188 = por %p186, %p187
    %p189 = scmp.ne.s32.totalorder %s181, %s184
    %p190 = scmp.eq.s32.totalorder %s14, 0
    %p191 = por %p189, %p190
    %p192 = scmp.ne.s32.totalorder %s181, %s184
    %p193 = scmp.eq.s32.totalorder %s19, 1
    %p194 = por %p192, %p193
    %p195 = scmp.ne.s32.totalorder %s184, %s185
    %p196 = scmp.eq.s32.totalorder %s19, 0
    %p197 = por %p195, %p196
    %p198 = scmp.ne.s32.totalorder %s184, %s185
    %p199 = scmp.eq.s32.totalorder %s20, 1
    %p200 = por %p198, %p199
    %p202 = scmp.ne.s32.totalorder %s185, %s201
    %p203 = scmp.eq.s32.totalorder %s20, 0
    %p204 = por %p202, %p203
    %s205 = ssub.s32 %s21, %s33
    %s206 = ssub.s32 %s22, %s29
    %s207 = sor.u32 %s205, %s206
    %p208 = scmp.eq.s32.totalorder %s207, 0
    %s210 = sadd.s32 %s209, 1
    %s211 = scalar_select %p208, %s209, %s210
    %p214 = pneg %p208
    %p215 = scmp.eq.s32.totalorder %s14, 1
    %p216 = por %p214, %p215
    %p217 = scmp.ne.s32.totalorder %s209, %s212
    %p218 = scmp.eq.s32.totalorder %s14, 0
    %p219 = por %p217, %p218
    %p220 = scmp.ne.s32.totalorder %s209, %s212
    %p221 = scmp.eq.s32.totalorder %s19, 1
    %p222 = por %p220, %p221
    %p223 = scmp.ne.s32.totalorder %s212, %s213
    %p224 = scmp.eq.s32.totalorder %s19, 0
    %p225 = por %p223, %p224
    %p226 = scmp.ne.s32.totalorder %s212, %s213
    %p227 = scmp.eq.s32.totalorder %s20, 1
    %p228 = por %p226, %p227
    %p230 = scmp.ne.s32.totalorder %s213, %s229
    %p231 = scmp.eq.s32.totalorder %s20, 0
    %p232 = por %p230, %p231
    %s233 = ssub.s32 %s21, %s33
    %s234 = ssub.s32 %s22, %s29
    %s235 = sor.u32 %s233, %s234
    %p236 = scmp.eq.s32.totalorder %s235, 0
    %s238 = sadd.s32 %s237, 1
    %s239 = scalar_select %p236, %s237, %s238
    %p242 = pneg %p236
    %p243 = scmp.eq.s32.totalorder %s14, 1
    %p244 = por %p242, %p243
    %p245 = scmp.ne.s32.totalorder %s237, %s240
    %p246 = scmp.eq.s32.totalorder %s14, 0
    %p247 = por %p245, %p246
    %p248 = scmp.ne.s32.totalorder %s237, %s240
    %p249 = scmp.eq.s32.totalorder %s19, 1
    %p250 = por %p248, %p249
    %p251 = scmp.ne.s32.totalorder %s240, %s241
    %p252 = scmp.eq.s32.totalorder %s19, 0
    %p253 = por %p251, %p252
    %p254 = scmp.ne.s32.totalorder %s240, %s241
    %p255 = scmp.eq.s32.totalorder %s20, 1
    %p256 = por %p254, %p255
    %p258 = scmp.ne.s32.totalorder %s241, %s257
    %p259 = scmp.eq.s32.totalorder %s20, 0
    %p260 = por %p258, %p259
    %p261 = scmp.le.s32.totalorder 1, %s14
    %p262 = scmp.lt.s32.totalorder %s14, 3
    %p263 = pnand %p261, %p262
    %p264 = pneg %p263
    // Predicated region
    $region9: #{conv_block_forward.3} parent=5 // pred_check
      _
    $region10: #{conv_block_forward.3} parent=5 // pred_check_branch
      %266 = sbr.rel (%p263) target = $region12
    $region11: #{conv_block_forward.3} parent=5 // pred_region
      %s267 = ssub.s32 %s14, 1
      // Predicated region
      $region13: #{conv_block_forward.3} parent=11 // pred_check
        %p268 = pneg %p169
      $region14: #{conv_block_forward.3} parent=11 // pred_check_branch
        %270 = sbr.rel (%p268) target = $region16
      $region15: #{conv_block_forward.3} parent=11 // pred_region
        _
      $region16: #{conv_block_forward.3} parent=11 // pred_fallthru
        _
    $region12: #{conv_block_forward.3} parent=5 // pred_fallthru
      _
    %p271 = scmp.lt.s32.totalorder %s14, 2
    // Predicated region
    $region17: #{conv_block_forward.3} parent=5 // pred_check
      %p272 = pneg %p271
    $region18: #{conv_block_forward.3} parent=5 // pred_check_branch
      %274 = sbr.rel (%p272) target = $region20
    $region19: #{conv_block_forward.3} parent=5 // pred_region
      // Predicated region
      $region21: #{conv_block_forward.3} parent=19 // pred_check
        %p275 = pneg %p48
      $region22: #{conv_block_forward.3} parent=19 // pred_check_branch
        %277 = sbr.rel (%p275) target = $region24
      $region23: #{conv_block_forward.3} parent=19 // pred_region
        %s278 = smul.u32 2, %s22
        %p279 = scmp.lt.s32.totalorder %s21, 1
        %s280 = scalar_select %p279, %s21, 1
        %p281 = scmp.lt.s32.totalorder %s278, 1
        %s282 = scalar_select %p281, %s278, 1
        %s283 = smul.addr %s280, 2
        %s284 = sadd.s32 %s282, %s283
        %s285 = smul.addr %s284, 8
        %s286 = scalar_lea.vmem %s0, %s285
        %s287 = smul.u32 2, %s22
      $region24: #{conv_block_forward.3} parent=19 // pred_fallthru
        _
      // Predicated region
      $region25: #{conv_block_forward.3} parent=19 // pred_check
        %p288 = pneg %p82
      $region26: #{conv_block_forward.3} parent=19 // pred_check_branch
        %290 = sbr.rel (%p288) target = $region28
      $region27: #{conv_block_forward.3} parent=19 // pred_region
        %s291 = ssub.s32 %s22, 1
        %p292 = scmp.gt.s32.totalorder %s291, 0
        %s293 = scalar_select %p292, %s291, 0
        %p294 = scmp.lt.s32.totalorder %s21, 1
        %s295 = scalar_select %p294, %s21, 1
        %p296 = scmp.lt.s32.totalorder %s293, 0
        %s297 = scalar_select %p296, %s293, 0
        %s298 = sadd.s32 %s297, %s295
        %s299 = smul.addr %s298, 2
        %s300 = scalar_lea.vmem %s1, %s299
        %s301 = ssub.s32 %s22, 1
        %p302 = scmp.gt.s32.totalorder %s301, 0
        %s303 = scalar_select %p302, %s301, 0
      $region28: #{conv_block_forward.3} parent=19 // pred_fallthru
        _
      // Predicated region
      $region29: #{conv_block_forward.3} parent=19 // pred_check
        %p304 = pneg %p116
      $region30: #{conv_block_forward.3} parent=19 // pred_check_branch
        %306 = sbr.rel (%p304) target = $region32
      $region31: #{conv_block_forward.3} parent=19 // pred_region
        %s307 = sadd.s32 %s22, 1
        %p308 = scmp.lt.s32.totalorder %s307, 0
        %s309 = scalar_select %p308, %s307, 0
        %p310 = scmp.lt.s32.totalorder %s21, 1
        %s311 = scalar_select %p310, %s21, 1
        %p312 = scmp.lt.s32.totalorder %s309, 0
        %s313 = scalar_select %p312, %s309, 0
        %s314 = sadd.s32 %s313, %s311
        %s315 = smul.addr %s314, 2
        %s316 = scalar_lea.vmem %s2, %s315
        %s317 = sadd.s32 %s22, 1
        %p318 = scmp.lt.s32.totalorder %s317, 0
        %s319 = scalar_select %p318, %s317, 0
      $region32: #{conv_block_forward.3} parent=19 // pred_fallthru
        _
      // Predicated region
      $region33: #{conv_block_forward.3} parent=19 // pred_check
        %p320 = pneg %p142
      $region34: #{conv_block_forward.3} parent=19 // pred_check_branch
        %322 = sbr.rel (%p320) target = $region36
      $region35: #{conv_block_forward.3} parent=19 // pred_region
        %p323 = scmp.lt.s32.totalorder %s21, 1
        %s324 = scalar_select %p323, %s21, 1
        %s325 = scalar_lea.vmem %s3, %s324
      $region36: #{conv_block_forward.3} parent=19 // pred_fallthru
        _
    $region20: #{conv_block_forward.3} parent=5 // pred_fallthru
      _
    %p326 = scmp.le.s32.totalorder 1, %s14
    %p327 = scmp.lt.s32.totalorder %s14, 3
    %p328 = pnand %p326, %p327
    %p329 = pneg %p328
    // Predicated region
    $region37: #{conv_block_forward.3} parent=5 // pred_check
      _
    $region38: #{conv_block_forward.3} parent=5 // pred_check_branch
      %331 = sbr.rel (%p328) target = $region40
    $region39: #{conv_block_forward.3} parent=5 // pred_region
      %s332 = ssub.s32 %s14, 1
      %s333 = smul.u32 2, %s24
      %p334 = scmp.lt.s32.totalorder %s23, 1
      %s335 = scalar_select %p334, %s23, 1
      %p336 = scmp.lt.s32.totalorder %s333, 1
      %s337 = scalar_select %p336, %s333, 1
      %s338 = smul.addr %s335, 2
      %s339 = sadd.s32 %s337, %s338
      %s340 = smul.addr %s339, 8
      %s341 = scalar_lea.vmem %s0, %s340
      %p342 = pneg %p54
      %p343 = pneg %p51
      %s344 = ssub.s32 %s24, 1
      %p345 = scmp.gt.s32.totalorder %s344, 0
      %s346 = scalar_select %p345, %s344, 0
      %p347 = scmp.lt.s32.totalorder %s23, 1
      %s348 = scalar_select %p347, %s23, 1
      %p349 = scmp.lt.s32.totalorder %s346, 0
      %s350 = scalar_select %p349, %s346, 0
      %s351 = sadd.s32 %s350, %s348
      %s352 = smul.addr %s351, 2
      %s353 = scalar_lea.vmem %s1, %s352
      %p354 = pneg %p88
      %p355 = pneg %p85
      %s356 = sadd.s32 %s24, 1
      %p357 = scmp.lt.s32.totalorder %s356, 0
      %s358 = scalar_select %p357, %s356, 0
      %p359 = scmp.lt.s32.totalorder %s23, 1
      %s360 = scalar_select %p359, %s23, 1
      %p361 = scmp.lt.s32.totalorder %s358, 0
      %s362 = scalar_select %p361, %s358, 0
      %s363 = sadd.s32 %s362, %s360
      %s364 = smul.addr %s363, 2
      %s365 = scalar_lea.vmem %s2, %s364
      %p366 = pneg %p122
      %p367 = pneg %p119
      %p368 = scmp.lt.s32.totalorder %s23, 1
      %s369 = scalar_select %p368, %s23, 1
      %s370 = scalar_lea.vmem %s3, %s369
      %p371 = pneg %p148
      %p372 = pneg %p145
      %p373 = pneg %p169
      %p374 = pneg %p166
      %p375 = pneg %p197
      %p376 = pneg %p194
      %s377 = smul.u32 2, %s24
      %p378 = scmp.lt.s32.totalorder %s23, 1
      %s379 = scalar_select %p378, %s23, 1
      %p380 = scmp.lt.s32.totalorder %s377, 1
      %s381 = scalar_select %p380, %s377, 1
      %s382 = smul.addr %s381, 2
      %s383 = smul.addr %s379, 4
      %s384 = sadd.s32 %s382, %s383
      %s385 = smul.addr %s384, 8
      %s386 = scalar_lea.vmem %s5, %s385
      %p387 = pneg %p225
      %p388 = pneg %p222
      %p389 = scmp.lt.s32.totalorder %s23, 1
      %s390 = scalar_select %p389, %s23, 1
      %p391 = scmp.lt.s32.totalorder %s24, 0
      %s392 = scalar_select %p391, %s24, 0
      %s393 = smul.addr %s392, 2
      %s394 = smul.addr %s390, 2
      %s395 = sadd.s32 %s393, %s394
      %s396 = smul.addr %s395, 2
      %s397 = scalar_lea.vmem %s6, %s396
      %p398 = pneg %p253
      %p399 = pneg %p250
      %p400 = scmp.lt.s32.totalorder %s23, 1
      %s401 = scalar_select %p400, %s23, 1
      %p402 = scmp.lt.s32.totalorder %s24, 0
      %s403 = scalar_select %p402, %s24, 0
      %s404 = smul.addr %s403, 2
      %s405 = smul.addr %s401, 2
      %s406 = sadd.s32 %s404, %s405
      %s407 = smul.addr %s406, 2
      %s408 = scalar_lea.vmem %s7, %s407
      %s409 = smul.u32 2, %s24
      %p410 = scmp.lt.s32.totalorder %s23, 1
      %s411 = scalar_select %p410, %s23, 1
      %p412 = scmp.lt.s32.totalorder %s409, 1
      %s413 = scalar_select %p412, %s409, 1
      %s414 = smul.addr %s411, 2
      %s415 = sadd.s32 %s413, %s414
      %s416 = smul.addr %s415, 8
      %s417 = scalar_lea.vmem %s0, %s416
      %s418 = smul.u32 2, %s24
      %s419 = ssub.s32 %s24, 1
      %p420 = scmp.gt.s32.totalorder %s419, 0
      %s421 = scalar_select %p420, %s419, 0
      %p422 = scmp.lt.s32.totalorder %s23, 1
      %s423 = scalar_select %p422, %s23, 1
      %p424 = scmp.lt.s32.totalorder %s421, 0
      %s425 = scalar_select %p424, %s421, 0
      %s426 = sadd.s32 %s425, %s423
      %s427 = smul.addr %s426, 2
      %s428 = scalar_lea.vmem %s1, %s427
      %s429 = ssub.s32 %s24, 1
      %p430 = scmp.gt.s32.totalorder %s429, 0
      %s431 = scalar_select %p430, %s429, 0
      %s432 = sadd.s32 %s24, 1
      %p433 = scmp.lt.s32.totalorder %s432, 0
      %s434 = scalar_select %p433, %s432, 0
      %p435 = scmp.lt.s32.totalorder %s23, 1
      %s436 = scalar_select %p435, %s23, 1
      %p437 = scmp.lt.s32.totalorder %s434, 0
      %s438 = scalar_select %p437, %s434, 0
      %s439 = sadd.s32 %s438, %s436
      %s440 = smul.addr %s439, 2
      %s441 = scalar_lea.vmem %s2, %s440
      %s442 = sadd.s32 %s24, 1
      %p443 = scmp.lt.s32.totalorder %s442, 0
      %s444 = scalar_select %p443, %s442, 0
      %p445 = scmp.lt.s32.totalorder %s23, 1
      %s446 = scalar_select %p445, %s23, 1
      %s447 = scalar_lea.vmem %s3, %s446
      %s448 = smul.u32 2, %s24
      %p449 = scmp.lt.s32.totalorder %s23, 1
      %s450 = scalar_select %p449, %s23, 1
      %p451 = scmp.lt.s32.totalorder %s448, 1
      %s452 = scalar_select %p451, %s448, 1
      %s453 = smul.addr %s452, 2
      %s454 = smul.addr %s450, 4
      %s455 = sadd.s32 %s453, %s454
      %s456 = smul.addr %s455, 8
      %s457 = scalar_lea.vmem %s5, %s456
      %s458 = smul.u32 2, %s24
      %p459 = scmp.lt.s32.totalorder %s23, 1
      %s460 = scalar_select %p459, %s23, 1
      %p461 = scmp.lt.s32.totalorder %s24, 0
      %s462 = scalar_select %p461, %s24, 0
      %s463 = smul.addr %s462, 2
      %s464 = smul.addr %s460, 2
      %s465 = sadd.s32 %s463, %s464
      %s466 = smul.addr %s465, 2
      %s467 = scalar_lea.vmem %s6, %s466
      %p468 = scmp.lt.s32.totalorder %s23, 1
      %s469 = scalar_select %p468, %s23, 1
      %p470 = scmp.lt.s32.totalorder %s24, 0
      %s471 = scalar_select %p470, %s24, 0
      %s472 = smul.addr %s471, 2
      %s473 = smul.addr %s469, 2
      %s474 = sadd.s32 %s472, %s473
      %s475 = smul.addr %s474, 2
      %s476 = scalar_lea.vmem %s7, %s475
      %v477 = vld [vmem:[%s447] sm:$0x1]
      %v478 = vld [vmem:[%s417] sm:$0xff]
      %v479 = vld [vmem:[%s417 + $0x8] sm:$0xff]
      %v481 = vperm.slane %v477, 0
      %v483 = vadd.f32 %v478, %v481
      %v484 = vadd.f32 %v479, %v481
      %v485 = vld [vmem:[%s428] sm:$0x3]
      %v486 = vld [vmem:[%s441] sm:$0x3]
      %p487 = scmp.gt.s32.totalorder %s24, 0
      %s488 = scalar_select %p487, 1, 0
      %s489 = scvt.s32.f32 %s488
      %p490 = scmp.lt.s32.totalorder %s24, 0
      %s491 = scalar_select %p490, 1, 0
      %s492 = scvt.s32.f32 %s491
      %v493 = vadd.f32 %v485, %v481
      %v494 = vstv %s489
      %v495 = vmul.f32 %v493, %v494
      %v496 = vadd.f32 %v486, %v477
      %v497 = vstv %s492
      %v498 = vmul.f32 %v496, %v497
      %v500 = vrot.slane %v495, 1
      %vm504 = vcmask 1040384
      %v505 = vrot.slane %v483, 7
      %v506 = vrot.slane %v484, 7
      %v507 = vsel %vm504, %v505, %v506
      %v512 = vrot.slane %v498, 7
      %v514 = vsel %vm504, %v500, %v505
      %v515 = vsel %vm504, %v506, %v512
      %vm518 = vcmask 1046528
      %v519 = vrot.slane %v514, 1
      %v520 = vrot.slane %v507, 1
      %v521 = vsel %vm518, %v519, %v520
      %v522 = vrot.slane %v515, 1
      %v523 = vsel %vm518, %v520, %v522
      %524 = vrot.lane.b32.xlu0 %v521, 72
      %v525 = vpop.permute.xlu0 %524
      %526 = vrot.lane.b32.xlu0 %v523, 72
      %v527 = vpop.permute.xlu0 %526
      %vm530 = vcmask 1045504
      %v531 = vrot.slane %v514, 2
      %v532 = vrot.slane %v507, 2
      %v533 = vsel %vm530, %v531, %v532
      %v534 = vrot.slane %v515, 2
      %v535 = vsel %vm530, %v532, %v534
      %536 = vrot.lane.b32.xlu0 %v533, 16
      %v537 = vpop.permute.xlu0 %536
      %538 = vrot.lane.b32.xlu0 %v535, 16
      %v539 = vpop.permute.xlu0 %538
      %vm542 = vcmask 588800
      %v543 = vsel %vm542, %v514, %v525
      %v544 = vsel %vm542, %v507, %v527
      %vm545 = vcmask 130048
      %v546 = vsel %vm545, %v525, %v537
      %v547 = vsel %vm545, %v527, %v539
      %v548 = vld [vmem:[%s4] sm:$0xff]
      %v549 = vld [vmem:[%s4 + $0x8] sm:$0xff]
      %v550 = vld [vmem:[%s4 + $0x10] sm:$0xff]
      %v551 = vld [vmem:[%s4 + $0x18] sm:$0xff]
      %v552 = vld [vmem:[%s4 + $0x20] sm:$0xff]
      %v553 = vld [vmem:[%s4 + $0x28] sm:$0xff]
      %v554 = vld [vmem:[%s4 + $0x30] sm:$0xff]
      %v555 = vld [vmem:[%s4 + $0x38] sm:$0xff]
      %v556 = vld [vmem:[%s4 + $0x40] sm:$0xff]
      %v557 = vld [vmem:[%s4 + $0x48] sm:$0xff]
      %v558 = vld [vmem:[%s4 + $0x50] sm:$0xff]
      %v559 = vld [vmem:[%s4 + $0x58] sm:$0xff]
      %v560 = vld [vmem:[%s4 + $0x60] sm:$0xff]
      %v561 = vld [vmem:[%s4 + $0x68] sm:$0xff]
      %v562 = vld [vmem:[%s4 + $0x70] sm:$0xff]
      %v563 = vld [vmem:[%s4 + $0x78] sm:$0xff]
      %v564 = vld [vmem:[%s4 + $0x80] sm:$0xff]
      %v565 = vld [vmem:[%s4 + $0x88] sm:$0xff]
      %v566 = vld [vmem:[%s4 + $0x90] sm:$0xff]
      %v567 = vld [vmem:[%s4 + $0x98] sm:$0xff]
      %v568 = vld [vmem:[%s4 + $0xa0] sm:$0xff]
      %v569 = vld [vmem:[%s4 + $0xa8] sm:$0xff]
      %v570 = vld [vmem:[%s4 + $0xb0] sm:$0xff]
      %v571 = vld [vmem:[%s4 + $0xb8] sm:$0xff]
      %v572 = vld [vmem:[%s4 + $0xc0] sm:$0xff]
      %v573 = vld [vmem:[%s4 + $0xc8] sm:$0xff]
      %v574 = vld [vmem:[%s4 + $0xd0] sm:$0xff]
      %v575 = vld [vmem:[%s4 + $0xd8] sm:$0xff]
      %v576 = vld [vmem:[%s4 + $0xe0] sm:$0xff]
      %v577 = vld [vmem:[%s4 + $0xe8] sm:$0xff]
      %v578 = vld [vmem:[%s4 + $0xf0] sm:$0xff]
      %v579 = vld [vmem:[%s4 + $0xf8] sm:$0xff]
      %v580 = vld [vmem:[%s4 + $0x100] sm:$0xff]
      %v581 = vld [vmem:[%s4 + $0x108] sm:$0xff]
      %v582 = vld [vmem:[%s4 + $0x110] sm:$0xff]
      %v583 = vld [vmem:[%s4 + $0x118] sm:$0xff]
      %v584 = vld [vmem:[%s4 + $0x120] sm:$0xff]
      %v585 = vld [vmem:[%s4 + $0x128] sm:$0xff]
      %v586 = vld [vmem:[%s4 + $0x130] sm:$0xff]
      %v587 = vld [vmem:[%s4 + $0x138] sm:$0xff]
      %v588 = vld [vmem:[%s4 + $0x140] sm:$0xff]
      %v589 = vld [vmem:[%s4 + $0x148] sm:$0xff]
      %v590 = vld [vmem:[%s4 + $0x150] sm:$0xff]
      %v591 = vld [vmem:[%s4 + $0x158] sm:$0xff]
      %v592 = vld [vmem:[%s4 + $0x160] sm:$0xff]
      %v593 = vld [vmem:[%s4 + $0x168] sm:$0xff]
      %v594 = vld [vmem:[%s4 + $0x170] sm:$0xff]
      %v595 = vld [vmem:[%s4 + $0x178] sm:$0xff]
      %v596 = vld [vmem:[%s4 + $0x180] sm:$0xff]
      %v597 = vld [vmem:[%s4 + $0x188] sm:$0xff]
      %v598 = vld [vmem:[%s4 + $0x190] sm:$0xff]
      %v599 = vld [vmem:[%s4 + $0x198] sm:$0xff]
      %v600 = vld [vmem:[%s4 + $0x1a0] sm:$0xff]
      %v601 = vld [vmem:[%s4 + $0x1a8] sm:$0xff]
      %vm602 = vcmask 719872
      %v604 = vsel %vm602, %v546, 0
      %v607 = vsel %vm602, %v547, 0
      %609 = vmatpush.msra.mxu0 %v578
      %610 = vmatpush.msra.mxu0 %v576
      %611 = vmatpush.msra.mxu0 %v574
      %612 = vmatpush.msra.mxu0 %v572
      %613 = vmatpush.msra.mxu0 %v570
      %614 = vmatpush.msra.mxu0 %v568
      %615 = vmatpush.msra.mxu0 %v566
      %616 = vmatpush.msra.mxu0 %v564
      %617 = vmatpush.msra.mxu0 %v562
      %618 = vmatpush.msra.mxu0 %v560
      %619 = vmatpush.msra.mxu0 %v558
      %620 = vmatpush.msra.mxu0 %v556
      %621 = vmatpush.msra.mxu0 %v554
      %622 = vmatpush.msra.mxu0 %v552
      %623 = vmatpush.msra.mxu0 %v550
      %624 = vmatpush.msra.mxu0 %v548
      %625 = vmatmul.f32.gmra.mxu0 %v543
      %v626 = vpop.f32.mrf.mxu0
      %v627 = vadd.f32 0.0, %v626
      %628 = vmatmul.f32.gmra.mxu0 %v544
      %v629 = vpop.f32.mrf.mxu0
      %v630 = vadd.f32 0.0, %v629
      %631 = vdwg.mxu0
      %632 = vmatpush.msra.mxu0 0.0
      %633 = vmatpush.msra.mxu0 0.0
      %634 = vmatpush.msra.mxu0 0.0
      %635 = vmatpush.msra.mxu0 0.0
      %636 = vmatpush.msra.mxu0 0.0
      %637 = vmatpush.msra.mxu0 %v600
      %638 = vmatpush.msra.mxu0 %v598
      %639 = vmatpush.msra.mxu0 %v596
      %640 = vmatpush.msra.mxu0 %v594
      %641 = vmatpush.msra.mxu0 %v592
      %642 = vmatpush.msra.mxu0 %v590
      %643 = vmatpush.msra.mxu0 %v588
      %644 = vmatpush.msra.mxu0 %v586
      %645 = vmatpush.msra.mxu0 %v584
      %646 = vmatpush.msra.mxu0 %v582
      %647 = vmatpush.msra.mxu0 %v580
      %648 = vmatmul.f32.gmra.mxu0 %v604
      %v649 = vpop.f32.mrf.mxu0
      %v650 = vadd.f32 %v627, %v649
      %651 = vmatmul.f32.gmra.mxu0 %v607
      %v652 = vpop.f32.mrf.mxu0
      %v653 = vadd.f32 %v630, %v652
      %654 = vdwg.mxu0
      %655 = vmatpush.msra.mxu0 %v579
      %656 = vmatpush.msra.mxu0 %v577
      %657 = vmatpush.msra.mxu0 %v575
      %658 = vmatpush.msra.mxu0 %v573
      %659 = vmatpush.msra.mxu0 %v571
      %660 = vmatpush.msra.mxu0 %v569
      %661 = vmatpush.msra.mxu0 %v567
      %662 = vmatpush.msra.mxu0 %v565
      %663 = vmatpush.msra.mxu0 %v563
      %664 = vmatpush.msra.mxu0 %v561
      %665 = vmatpush.msra.mxu0 %v559
      %666 = vmatpush.msra.mxu0 %v557
      %667 = vmatpush.msra.mxu0 %v555
      %668 = vmatpush.msra.mxu0 %v553
      %669 = vmatpush.msra.mxu0 %v551
      %670 = vmatpush.msra.mxu0 %v549
      %671 = vmatmul.f32.gmra.mxu0 %v543
      %v672 = vpop.f32.mrf.mxu0
      %v673 = vadd.f32 0.0, %v672
      %674 = vmatmul.f32.gmra.mxu0 %v544
      %v675 = vpop.f32.mrf.mxu0
      %v676 = vadd.f32 0.0, %v675
      %677 = vdwg.mxu0
      %678 = vmatpush.msra.mxu0 0.0
      %679 = vmatpush.msra.mxu0 0.0
      %680 = vmatpush.msra.mxu0 0.0
      %681 = vmatpush.msra.mxu0 0.0
      %682 = vmatpush.msra.mxu0 0.0
      %683 = vmatpush.msra.mxu0 %v601
      %684 = vmatpush.msra.mxu0 %v599
      %685 = vmatpush.msra.mxu0 %v597
      %686 = vmatpush.msra.mxu0 %v595
      %687 = vmatpush.msra.mxu0 %v593
      %688 = vmatpush.msra.mxu0 %v591
      %689 = vmatpush.msra.mxu0 %v589
      %690 = vmatpush.msra.mxu0 %v587
      %691 = vmatpush.msra.mxu0 %v585
      %692 = vmatpush.msra.mxu0 %v583
      %693 = vmatpush.msra.mxu0 %v581
      %694 = vmatmul.f32.gmra.mxu0 %v604
      %v695 = vpop.f32.mrf.mxu0
      %v696 = vadd.f32 %v673, %v695
      %697 = vmatmul.f32.gmra.mxu0 %v607
      %v698 = vpop.f32.mrf.mxu0
      %v699 = vadd.f32 %v676, %v698
      %700 = vdwg.mxu0
      %701 = vst [vmem:[%s457] sm:$0xff] %v650
      %702 = vst.msk [vmem:[%s457 + $0x8] sm:$0xff] %vm545, %v696
      %703 = vst [vmem:[%s457 + $0x10] sm:$0xff] %v653
      %704 = vst.msk [vmem:[%s457 + $0x18] sm:$0xff] %vm545, %v699
      %v707 = vrot.slane %v653, 6
      %v708 = vrot.slane %v699, 6
      %v711 = vsel %vm504, %v650, %v707
      %v712 = vsel %vm504, %v696, %v708
      %v715 = vrot.slane %v712, 6
      %vm716 = vcmask 1041408
      %v717 = vsel %vm716, %v711, %v715
      %vm719 = vcmask 125954
      %vm720 = vmor %vm719, %vm716
      %721 = vst.msk [vmem:[%s467] sm:$0xf] %vm720, %v717
      %v722 = vadd.f32 %v650, %v653
      %v723 = vrot.slane %v722, 4
      %v724 = vadd.f32 %v722, %v723
      %v725 = vrot.slane %v724, 2
      %v726 = vadd.f32 %v724, %v725
      %v727 = vrot.slane %v726, 1
      %v728 = vadd.f32 %v726, %v727
      %v729 = vsel %vm545, %v696, 0.0
      %v730 = vsel %vm545, %v699, 0.0
      %v731 = vadd.f32 %v729, %v730
      %v732 = vrot.slane %v731, 4
      %v733 = vadd.f32 %v731, %v732
      %v734 = vrot.slane %v733, 2
      %v735 = vadd.f32 %v733, %v734
      %v736 = vrot.slane %v735, 1
      %v737 = vadd.f32 %v735, %v736
      %v738 = vmul.f32 %v650, %v650
      %v739 = vmul.f32 %v696, %v696
      %v740 = vmul.f32 %v653, %v653
      %v741 = vmul.f32 %v699, %v699
      %v742 = vadd.f32 %v738, %v740
      %v743 = vrot.slane %v742, 4
      %v744 = vadd.f32 %v742, %v743
      %v745 = vrot.slane %v744, 2
      %v746 = vadd.f32 %v744, %v745
      %v747 = vrot.slane %v746, 1
      %v748 = vadd.f32 %v746, %v747
      %v749 = vsel %vm545, %v739, 0.0
      %v750 = vsel %vm545, %v741, 0.0
      %v751 = vadd.f32 %v749, %v750
      %v752 = vrot.slane %v751, 4
      %v753 = vadd.f32 %v751, %v752
      %v754 = vrot.slane %v753, 2
      %v755 = vadd.f32 %v753, %v754
      %v756 = vrot.slane %v755, 1
      %v757 = vadd.f32 %v755, %v756
      %v758 = vsel %vm504, %v728, %v748
      %v759 = vsel %vm504, %v737, %v757
      %v762 = vrot.slane %v759, 6
      %v763 = vsel %vm716, %v758, %v762
      %765 = vst.msk [vmem:[%s476] sm:$0xf] %vm720, %v763
      %s766 = smul.u32 2, %s24
      %p767 = scmp.lt.s32.totalorder %s23, 1
      %s768 = scalar_select %p767, %s23, 1
      %p769 = scmp.lt.s32.totalorder %s766, 1
      %s770 = scalar_select %p769, %s766, 1
      %s771 = smul.addr %s770, 2
      %s772 = smul.addr %s768, 4
      %s773 = sadd.s32 %s771, %s772
      %s774 = smul.addr %s773, 8
      %s775 = scalar_lea.vmem %s5, %s774
      %p776 = scmp.lt.s32.totalorder %s23, 1
      %s777 = scalar_select %p776, %s23, 1
      %p778 = scmp.lt.s32.totalorder %s24, 0
      %s779 = scalar_select %p778, %s24, 0
      %s780 = smul.addr %s779, 2
      %s781 = smul.addr %s777, 2
      %s782 = sadd.s32 %s780, %s781
      %s783 = smul.addr %s782, 2
      %s784 = scalar_lea.vmem %s6, %s783
      %p785 = scmp.lt.s32.totalorder %s23, 1
      %s786 = scalar_select %p785, %s23, 1
      %p787 = scmp.lt.s32.totalorder %s24, 0
      %s788 = scalar_select %p787, %s24, 0
      %s789 = smul.addr %s788, 2
      %s790 = smul.addr %s786, 2
      %s791 = sadd.s32 %s789, %s790
      %s792 = smul.addr %s791, 2
      %s793 = scalar_lea.vmem %s7, %s792
      // Predicated region
      $region41: #{conv_block_forward.3} parent=39 // pred_check
        %p794 = pneg %p194
      $region42: #{conv_block_forward.3} parent=39 // pred_check_branch
        %796 = sbr.rel (%p794) target = $region44
      $region43: #{conv_block_forward.3} parent=39 // pred_region
        %s797 = smul.u32 2, %s24
      $region44: #{conv_block_forward.3} parent=39 // pred_fallthru
        _
      // Predicated region
      $region45: #{conv_block_forward.3} parent=39 // pred_check
        %p798 = pneg %p222
      $region46: #{conv_block_forward.3} parent=39 // pred_check_branch
        %800 = sbr.rel (%p798) target = $region48
      $region47: #{conv_block_forward.3} parent=39 // pred_region
        _
      $region48: #{conv_block_forward.3} parent=39 // pred_fallthru
        _
      // Predicated region
      $region49: #{conv_block_forward.3} parent=39 // pred_check
        %p801 = pneg %p250
      $region50: #{conv_block_forward.3} parent=39 // pred_check_branch
        %803 = sbr.rel (%p801) target = $region52
      $region51: #{conv_block_forward.3} parent=39 // pred_region
        _
      $region52: #{conv_block_forward.3} parent=39 // pred_fallthru
        _
    $region40: #{conv_block_forward.3} parent=5 // pred_fallthru
      _
    %p804 = scmp.le.s32.totalorder 2, %s14
    // Predicated region
    $region53: #{conv_block_forward.3} parent=5 // pred_check
      %p805 = pneg %p804
    $region54: #{conv_block_forward.3} parent=5 // pred_check_branch
      %807 = sbr.rel (%p805) target = $region56
    $region55: #{conv_block_forward.3} parent=5 // pred_region
      %s808 = ssub.s32 %s14, 2
      // Predicated region
      $region57: #{conv_block_forward.3} parent=55 // pred_check
        %p809 = pneg %p200
      $region58: #{conv_block_forward.3} parent=55 // pred_check_branch
        %811 = sbr.rel (%p809) target = $region60
      $region59: #{conv_block_forward.3} parent=55 // pred_region
        %s812 = smul.u32 2, %s26
        %p813 = scmp.lt.s32.totalorder %s25, 1
        %s814 = scalar_select %p813, %s25, 1
        %p815 = scmp.lt.s32.totalorder %s812, 1
        %s816 = scalar_select %p815, %s812, 1
        %s817 = smul.addr %s816, 2
        %s818 = smul.addr %s814, 4
        %s819 = sadd.s32 %s817, %s818
        %s820 = smul.addr %s819, 8
        %s821 = scalar_lea.vmem %s5, %s820
      $region60: #{conv_block_forward.3} parent=55 // pred_fallthru
        _
      // Predicated region
      $region61: #{conv_block_forward.3} parent=55 // pred_check
        %p822 = pneg %p228
      $region62: #{conv_block_forward.3} parent=55 // pred_check_branch
        %824 = sbr.rel (%p822) target = $region64
      $region63: #{conv_block_forward.3} parent=55 // pred_region
        %p825 = scmp.lt.s32.totalorder %s25, 1
        %s826 = scalar_select %p825, %s25, 1
        %p827 = scmp.lt.s32.totalorder %s26, 0
        %s828 = scalar_select %p827, %s26, 0
        %s829 = smul.addr %s828, 2
        %s830 = smul.addr %s826, 2
        %s831 = sadd.s32 %s829, %s830
        %s832 = smul.addr %s831, 2
        %s833 = scalar_lea.vmem %s6, %s832
      $region64: #{conv_block_forward.3} parent=55 // pred_fallthru
        _
      // Predicated region
      $region65: #{conv_block_forward.3} parent=55 // pred_check
        %p834 = pneg %p256
      $region66: #{conv_block_forward.3} parent=55 // pred_check_branch
        %836 = sbr.rel (%p834) target = $region68
      $region67: #{conv_block_forward.3} parent=55 // pred_region
        %p837 = scmp.lt.s32.totalorder %s25, 1
        %s838 = scalar_select %p837, %s25, 1
        %p839 = scmp.lt.s32.totalorder %s26, 0
        %s840 = scalar_select %p839, %s26, 0
        %s841 = smul.addr %s840, 2
        %s842 = smul.addr %s838, 2
        %s843 = sadd.s32 %s841, %s842
        %s844 = smul.addr %s843, 2
        %s845 = scalar_lea.vmem %s7, %s844
      $region68: #{conv_block_forward.3} parent=55 // pred_fallthru
        _
    $region56: #{conv_block_forward.3} parent=5 // pred_fallthru
      _
  $region6: #{conv_block_forward.3} parent=0 // loop_footer
    %s18 = sadd.s32 1, %s14
  $region7: #{conv_block_forward.3} parent=0 // loop_footer_branch
    %13 = sbr.rel target = $region3
  $region8: #{conv_block_forward.3} parent=0 // loop_exit
    _

// kernel: conv_block_forward.5
$region0: #{conv_block_forward.5}
  #allocation0 [shape = 'u32[]', space=smem, size = 0x4, offset = 0x4, fixed_abs, tag = 'smem constant byte address 0x4 - core index']
  #allocation1 [shape = 'u32[72,128]{1,0:T(1,128)}', space=vmem, size = 0x9000, scoped, tag = 'internal scratch']
  %s0 = inlined_call_operand.vmem [shape: f32[2,16,128], index: 0, kind: input, shape index: {}]
  %s1 = inlined_call_operand.vmem [shape: f32[1,1,128], index: 1, kind: input, shape index: {}]
  %s2 = inlined_call_operand.vmem [shape: f32[1,1,128], index: 2, kind: input, shape index: {}]
  %s3 = inlined_call_operand.vmem [shape: f32[2,16,128], index: 3, kind: output, shape index: {}]
  %s4 = sld [smem:[#allocation0]]
  $region45: #{conv_block_forward.5} parent=0
    _
  %s6 = ssub.s32 1, %s4
  %s7 = scalar_select 0, %s6, %s4
  loop: start=0, step=1, limit=4
  $region2: #{conv_block_forward.5} parent=0 // loop_pre_header
    _
  $region3: #{conv_block_forward.5} parent=0 // loop_header
    %s9 = sphi 0, %s13
    %p10 = scmp.ge.s32.totalorder %s9, 4
    %s16 = sphi 0, %s28
    %s17 = sphi 0, %s24
    %s18 = sphi 0, %s16
    %s19 = sphi 0, %s17
    %s20 = sphi 0, %s18
    %s21 = sphi 0, %s19
    %s33 = sphi 0, %s35
    %s36 = sphi 0, %s33
    %s37 = sphi 0, %s36
    %s53 = sphi 0, %s37
    %s57 = sphi 0, %s57
    %s59 = sphi 0, %s57
    %s60 = sphi 0, %s59
    %s74 = sphi 0, %s60
    %s78 = sphi 0, %s78
    %s80 = sphi 0, %s78
    %s81 = sphi 0, %s80
    %s95 = sphi 0, %s81
    %s103 = sphi 0, %s105
    %s106 = sphi 0, %s103
    %s107 = sphi 0, %s106
    %s123 = sphi 0, %s107
  $region4: #{conv_block_forward.5} parent=0 // loop_header_branch
    %12 = sbr.rel (%p10) target = $region8
  $region5: #{conv_block_forward.5} parent=0 // loop_body
    %s14 = ssub.s32 %s9, 1
    %s15 = ssub.s32 %s9, 2
    %s22 = sadd.s32 1, %s17
    %p23 = scmp.ge.s32.totalorder %s22, 1
    %s24 = scalar_select %p23, 0, %s22
    %s25 = sadd.s32 1, %s16
    %s26 = scalar_select %p23, %s25, %s16
    %p27 = scmp.ge.s32.totalorder %s26, 2
    %s28 = scalar_select %p27, 0, %s26
    %s29 = ssub.s32 %s16, %s28
    %s30 = ssub.s32 %s17, %s24
    %s31 = sor.u32 %s29, %s30
    %p32 = scmp.eq.s32.totalorder %s31, 0
    %s34 = sadd.s32 %s33, 1
    %s35 = scalar_select %p32, %s33, %s34
    %p38 = pneg %p32
    %p39 = scmp.eq.s32.totalorder %s9, 1
    %p40 = por %p38, %p39
    %p41 = scmp.ne.s32.totalorder %s33, %s36
    %p42 = scmp.eq.s32.totalorder %s9, 0
    %p43 = por %p41, %p42
    %p44 = scmp.ne.s32.totalorder %s33, %s36
    %p45 = scmp.eq.s32.totalorder %s14, 1
    %p46 = por %p44, %p45
    %p47 = scmp.ne.s32.totalorder %s36, %s37
    %p48 = scmp.eq.s32.totalorder %s14, 0
    %p49 = por %p47, %p48
    %p50 = scmp.ne.s32.totalorder %s36, %s37
    %p51 = scmp.eq.s32.totalorder %s15, 1
    %p52 = por %p50, %p51
    %p54 = scmp.ne.s32.totalorder %s37, %s53
    %p55 = scmp.eq.s32.totalorder %s15, 0
    %p56 = por %p54, %p55
    %s58 = sadd.s32 %s57, 1
    %p61 = scmp.eq.s32.totalorder %s9, 1
    %p62 = scmp.ne.s32.totalorder %s57, %s59
    %p63 = scmp.eq.s32.totalorder %s9, 0
    %p64 = por %p62, %p63
    %p65 = scmp.ne.s32.totalorder %s57, %s59
    %p66 = scmp.eq.s32.totalorder %s14, 1
    %p67 = por %p65, %p66
    %p68 = scmp.ne.s32.totalorder %s59, %s60
    %p69 = scmp.eq.s32.totalorder %s14, 0
    %p70 = por %p68, %p69
    %p71 = scmp.ne.s32.totalorder %s59, %s60
    %p72 = scmp.eq.s32.totalorder %s15, 1
    %p73 = por %p71, %p72
    %p75 = scmp.ne.s32.totalorder %s60, %s74
    %p76 = scmp.eq.s32.totalorder %s15, 0
    %p77 = por %p75, %p76
    %s79 = sadd.s32 %s78, 1
    %p82 = scmp.eq.s32.totalorder %s9, 1
    %p83 = scmp.ne.s32.totalorder %s78, %s80
    %p84 = scmp.eq.s32.totalorder %s9, 0
    %p85 = por %p83, %p84
    %p86 = scmp.ne.s32.totalorder %s78, %s80
    %p87 = scmp.eq.s32.totalorder %s14, 1
    %p88 = por %p86, %p87
    %p89 = scmp.ne.s32.totalorder %s80, %s81
    %p90 = scmp.eq.s32.totalorder %s14, 0
    %p91 = por %p89, %p90
    %p92 = scmp.ne.s32.totalorder %s80, %s81
    %p93 = scmp.eq.s32.totalorder %s15, 1
    %p94 = por %p92, %p93
    %p96 = scmp.ne.s32.totalorder %s81, %s95
    %p97 = scmp.eq.s32.totalorder %s15, 0
    %p98 = por %p96, %p97
    %s99 = ssub.s32 %s16, %s28
    %s100 = ssub.s32 %s17, %s24
    %s101 = sor.u32 %s99, %s100
    %p102 = scmp.eq.s32.totalorder %s101, 0
    %s104 = sadd.s32 %s103, 1
    %s105 = scalar_select %p102, %s103, %s104
    %p108 = pneg %p102
    %p109 = scmp.eq.s32.totalorder %s9, 1
    %p110 = por %p108, %p109
    %p111 = scmp.ne.s32.totalorder %s103, %s106
    %p112 = scmp.eq.s32.totalorder %s9, 0
    %p113 = por %p111, %p112
    %p114 = scmp.ne.s32.totalorder %s103, %s106
    %p115 = scmp.eq.s32.totalorder %s14, 1
    %p116 = por %p114, %p115
    %p117 = scmp.ne.s32.totalorder %s106, %s107
    %p118 = scmp.eq.s32.totalorder %s14, 0
    %p119 = por %p117, %p118
    %p120 = scmp.ne.s32.totalorder %s106, %s107
    %p121 = scmp.eq.s32.totalorder %s15, 1
    %p122 = por %p120, %p121
    %p124 = scmp.ne.s32.totalorder %s107, %s123
    %p125 = scmp.eq.s32.totalorder %s15, 0
    %p126 = por %p124, %p125
    %p127 = scmp.le.s32.totalorder 1, %s9
    %p128 = scmp.lt.s32.totalorder %s9, 3
    %p129 = pnand %p127, %p128
    %p130 = pneg %p129
    // Predicated region
    $region9: #{conv_block_forward.5} parent=5 // pred_check
      _
    $region10: #{conv_block_forward.5} parent=5 // pred_check_branch
      %132 = sbr.rel (%p129) target = $region12
    $region11: #{conv_block_forward.5} parent=5 // pred_region
      %s133 = ssub.s32 %s9, 1
      // Predicated region
      $region13: #{conv_block_forward.5} parent=11 // pred_check
        %p134 = pneg %p70
      $region14: #{conv_block_forward.5} parent=11 // pred_check_branch
        %136 = sbr.rel (%p134) target = $region16
      $region15: #{conv_block_forward.5} parent=11 // pred_region
        _
      $region16: #{conv_block_forward.5} parent=11 // pred_fallthru
        _
      // Predicated region
      $region17: #{conv_block_forward.5} parent=11 // pred_check
        %p137 = pneg %p91
      $region18: #{conv_block_forward.5} parent=11 // pred_check_branch
        %139 = sbr.rel (%p137) target = $region20
      $region19: #{conv_block_forward.5} parent=11 // pred_region
        _
      $region20: #{conv_block_forward.5} parent=11 // pred_fallthru
        _
    $region12: #{conv_block_forward.5} parent=5 // pred_fallthru
      _
    %p140 = scmp.lt.s32.totalorder %s9, 2
    // Predicated region
    $region21: #{conv_block_forward.5} parent=5 // pred_check
      %p141 = pneg %p140
    $region22: #{conv_block_forward.5} parent=5 // pred_check_branch
      %143 = sbr.rel (%p141) target = $region24
    $region23: #{conv_block_forward.5} parent=5 // pred_region
      // Predicated region
      $region25: #{conv_block_forward.5} parent=23 // pred_check
        %p144 = pneg %p43
      $region26: #{conv_block_forward.5} parent=23 // pred_check_branch
        %146 = sbr.rel (%p144) target = $region28
      $region27: #{conv_block_forward.5} parent=23 // pred_region
        %s147 = smul.u32 2, %s17
        %p148 = scmp.lt.s32.totalorder %s16, 1
        %s149 = scalar_select %p148, %s16, 1
        %p150 = scmp.lt.s32.totalorder %s147, 1
        %s151 = scalar_select %p150, %s147, 1
        %s152 = smul.addr %s149, 2
        %s153 = sadd.s32 %s151, %s152
        %s154 = smul.addr %s153, 8
        %s155 = scalar_lea.vmem %s0, %s154
        %s156 = smul.u32 2, %s17
      $region28: #{conv_block_forward.5} parent=23 // pred_fallthru
        _
    $region24: #{conv_block_forward.5} parent=5 // pred_fallthru
      _
    %p157 = scmp.le.s32.totalorder 1, %s9
    %p158 = scmp.lt.s32.totalorder %s9, 3
    %p159 = pnand %p157, %p158
    %p160 = pneg %p159
    // Predicated region
    $region29: #{conv_block_forward.5} parent=5 // pred_check
      _
    $region30: #{conv_block_forward.5} parent=5 // pred_check_branch
      %162 = sbr.rel (%p159) target = $region32
    $region31: #{conv_block_forward.5} parent=5 // pred_region
      %s163 = ssub.s32 %s9, 1
      %s164 = smul.u32 2, %s19
      %p165 = scmp.lt.s32.totalorder %s18, 1
      %s166 = scalar_select %p165, %s18, 1
      %p167 = scmp.lt.s32.totalorder %s164, 1
      %s168 = scalar_select %p167, %s164, 1
      %s169 = smul.addr %s166, 2
      %s170 = sadd.s32 %s168, %s169
      %s171 = smul.addr %s170, 8
      %s172 = scalar_lea.vmem %s0, %s171
      %p173 = pneg %p49
      %p174 = pneg %p46
      %p175 = pneg %p70
      %p176 = pneg %p67
      %p177 = pneg %p91
      %p178 = pneg %p88
      %p179 = pneg %p119
      %p180 = pneg %p116
      %s181 = smul.u32 2, %s19
      %p182 = scmp.lt.s32.totalorder %s18, 1
      %s183 = scalar_select %p182, %s18, 1
      %p184 = scmp.lt.s32.totalorder %s181, 1
      %s185 = scalar_select %p184, %s181, 1
      %s186 = smul.addr %s183, 2
      %s187 = sadd.s32 %s185, %s186
      %s188 = smul.addr %s187, 8
      %s189 = scalar_lea.vmem %s3, %s188
      %s190 = smul.u32 2, %s19
      %p191 = scmp.lt.s32.totalorder %s18, 1
      %s192 = scalar_select %p191, %s18, 1
      %p193 = scmp.lt.s32.totalorder %s190, 1
      %s194 = scalar_select %p193, %s190, 1
      %s195 = smul.addr %s192, 2
      %s196 = sadd.s32 %s194, %s195
      %s197 = smul.addr %s196, 8
      %s198 = scalar_lea.vmem %s0, %s197
      %s199 = smul.u32 2, %s19
      %s200 = smul.u32 2, %s19
      %p201 = scmp.lt.s32.totalorder %s18, 1
      %s202 = scalar_select %p201, %s18, 1
      %p203 = scmp.lt.s32.totalorder %s200, 1
      %s204 = scalar_select %p203, %s200, 1
      %s205 = smul.addr %s202, 2
      %s206 = sadd.s32 %s204, %s205
      %s207 = smul.addr %s206, 8
      %s208 = scalar_lea.vmem %s3, %s207
      %s209 = smul.u32 2, %s19
      %v210 = vld [vmem:[%s198] sm:$0xff]
      %v211 = vld [vmem:[%s198 + $0x8] sm:$0xff]
      %v212 = vld [vmem:[%s1] sm:$0x1]
      %v214 = vperm.slane %v212, 0
      %v216 = vmul.f32 %v210, %v214
      %v217 = vmul.f32 %v211, %v214
      %v218 = vld [vmem:[%s2] sm:$0x1]
      %v220 = vperm.slane %v218, 0
      %v222 = vadd.f32 %v216, %v220
      %v223 = vadd.f32 %v217, %v220
      %v224 = vmax.f32 %v222, 0.0
      %v225 = vmax.f32 %v223, 0.0
      %226 = vst [vmem:[%s208] sm:$0xff] %v224
      %227 = vst [vmem:[%s208 + $0x8] sm:$0xff] %v225
      %s228 = smul.u32 2, %s19
      %p229 = scmp.lt.s32.totalorder %s18, 1
      %s230 = scalar_select %p229, %s18, 1
      %p231 = scmp.lt.s32.totalorder %s228, 1
      %s232 = scalar_select %p231, %s228, 1
      %s233 = smul.addr %s230, 2
      %s234 = sadd.s32 %s232, %s233
      %s235 = smul.addr %s234, 8
      %s236 = scalar_lea.vmem %s3, %s235
      // Predicated region
      $region33: #{conv_block_forward.5} parent=31 // pred_check
        %p237 = pneg %p116
      $region34: #{conv_block_forward.5} parent=31 // pred_check_branch
        %239 = sbr.rel (%p237) target = $region36
      $region35: #{conv_block_forward.5} parent=31 // pred_region
        %s240 = smul.u32 2, %s19
      $region36: #{conv_block_forward.5} parent=31 // pred_fallthru
        _
    $region32: #{conv_block_forward.5} parent=5 // pred_fallthru
      _
    %p241 = scmp.le.s32.totalorder 2, %s9
    // Predicated region
    $region37: #{conv_block_forward.5} parent=5 // pred_check
      %p242 = pneg %p241
    $region38: #{conv_block_forward.5} parent=5 // pred_check_branch
      %244 = sbr.rel (%p242) target = $region40
    $region39: #{conv_block_forward.5} parent=5 // pred_region
      %s245 = ssub.s32 %s9, 2
      // Predicated region
      $region41: #{conv_block_forward.5} parent=39 // pred_check
        %p246 = pneg %p122
      $region42: #{conv_block_forward.5} parent=39 // pred_check_branch
        %248 = sbr.rel (%p246) target = $region44
      $region43: #{conv_block_forward.5} parent=39 // pred_region
        %s249 = smul.u32 2, %s21
        %p250 = scmp.lt.s32.totalorder %s20, 1
        %s251 = scalar_select %p250, %s20, 1
        %p252 = scmp.lt.s32.totalorder %s249, 1
        %s253 = scalar_select %p252, %s249, 1
        %s254 = smul.addr %s251, 2
        %s255 = sadd.s32 %s253, %s254
        %s256 = smul.addr %s255, 8
        %s257 = scalar_lea.vmem %s3, %s256
      $region44: #{conv_block_forward.5} parent=39 // pred_fallthru
        _
    $region40: #{conv_block_forward.5} parent=5 // pred_fallthru
      _
  $region6: #{conv_block_forward.5} parent=0 // loop_footer
    %s13 = sadd.s32 1, %s9
  $region7: #{conv_block_forward.5} parent=0 // loop_footer_branch
    %8 = sbr.rel target = $region3
  $region8: #{conv_block_forward.5} parent=0 // loop_exit
    _

// kernel: conv_block_forward.4
$region0: #{conv_block_forward.4}
  #allocation0 [shape = 'u32[]', space=smem, size = 0x4, offset = 0x4, fixed_abs, tag = 'smem constant byte address 0x4 - core index']
  #allocation1 [shape = 'u32[72,128]{1,0:T(1,128)}', space=vmem, size = 0x9000, scoped, tag = 'internal scratch']
  %s0 = inlined_call_operand.vmem [shape: f32[2,16,144], index: 0, kind: input, shape index: {}]
  %s1 = inlined_call_operand.vmem [shape: f32[2,1,2,144], index: 1, kind: input, shape index: {}, may-alias: {1,2}]
  %s2 = inlined_call_operand.vmem [shape: f32[2,1,2,144], index: 2, kind: input, shape index: {}, may-alias: {1,2}]
  %s3 = inlined_call_operand.vmem [shape: f32[1,1,144], index: 3, kind: input, shape index: {}]
  %s4 = inlined_call_operand.vmem [shape: f32[1,1,144], index: 4, kind: input, shape index: {}]
  %s5 = inlined_call_operand.vmem [shape: f32[432,128], index: 5, kind: input, shape index: {}]
  %s6 = inlined_call_operand.vmem [shape: f32[2,16,128], index: 6, kind: output, shape index: {0}]
  %s7 = inlined_call_operand.vmem [shape: f32[2,1,2,128], index: 7, kind: output, shape index: {1}]
  %8 = xla_tuple %s6, %s7
  %s9 = sld [smem:[#allocation0]]
  $region65: #{conv_block_forward.4} parent=0
    _
  %s11 = ssub.s32 1, %s9
  %s12 = scalar_select 0, %s11, %s9
  loop: start=0, step=1, limit=4
  $region2: #{conv_block_forward.4} parent=0 // loop_pre_header
    _
  $region3: #{conv_block_forward.4} parent=0 // loop_header
    %s14 = sphi 0, %s18
    %p15 = scmp.ge.s32.totalorder %s14, 4
    %s21 = sphi 0, %s33
    %s22 = sphi 0, %s29
    %s23 = sphi 0, %s21
    %s24 = sphi 0, %s22
    %s25 = sphi 0, %s23
    %s26 = sphi 0, %s24
    %s38 = sphi 0, %s40
    %s41 = sphi 0, %s38
    %s42 = sphi 0, %s41
    %s58 = sphi 0, %s42
    %s72 = sphi 0, %s74
    %s75 = sphi 0, %s72
    %s76 = sphi 0, %s75
    %s92 = sphi 0, %s76
    %s106 = sphi 0, %s108
    %s109 = sphi 0, %s106
    %s110 = sphi 0, %s109
    %s126 = sphi 0, %s110
    %s130 = sphi 0, %s130
    %s132 = sphi 0, %s130
    %s133 = sphi 0, %s132
    %s147 = sphi 0, %s133
    %s151 = sphi 0, %s151
    %s153 = sphi 0, %s151
    %s154 = sphi 0, %s153
    %s168 = sphi 0, %s154
    %s172 = sphi 0, %s172
    %s174 = sphi 0, %s172
    %s175 = sphi 0, %s174
    %s189 = sphi 0, %s175
    %s197 = sphi 0, %s199
    %s200 = sphi 0, %s197
    %s201 = sphi 0, %s200
    %s217 = sphi 0, %s201
    %s225 = sphi 0, %s227
    %s228 = sphi 0, %s225
    %s229 = sphi 0, %s228
    %s245 = sphi 0, %s229
  $region4: #{conv_block_forward.4} parent=0 // loop_header_branch
    %17 = sbr.rel (%p15) target = $region8
  $region5: #{conv_block_forward.4} parent=0 // loop_body
    %s19 = ssub.s32 %s14, 1
    %s20 = ssub.s32 %s14, 2
    %s27 = sadd.s32 1, %s22
    %p28 = scmp.ge.s32.totalorder %s27, 1
    %s29 = scalar_select %p28, 0, %s27
    %s30 = sadd.s32 1, %s21
    %s31 = scalar_select %p28, %s30, %s21
    %p32 = scmp.ge.s32.totalorder %s31, 2
    %s33 = scalar_select %p32, 0, %s31
    %s34 = ssub.s32 %s21, %s33
    %s35 = ssub.s32 %s22, %s29
    %s36 = sor.u32 %s34, %s35
    %p37 = scmp.eq.s32.totalorder %s36, 0
    %s39 = sadd.s32 %s38, 1
    %s40 = scalar_select %p37, %s38, %s39
    %p43 = pneg %p37
    %p44 = scmp.eq.s32.totalorder %s14, 1
    %p45 = por %p43, %p44
    %p46 = scmp.ne.s32.totalorder %s38, %s41
    %p47 = scmp.eq.s32.totalorder %s14, 0
    %p48 = por %p46, %p47
    %p49 = scmp.ne.s32.totalorder %s38, %s41
    %p50 = scmp.eq.s32.totalorder %s19, 1
    %p51 = por %p49, %p50
    %p52 = scmp.ne.s32.totalorder %s41, %s42
    %p53 = scmp.eq.s32.totalorder %s19, 0
    %p54 = por %p52, %p53
    %p55 = scmp.ne.s32.totalorder %s41, %s42
    %p56 = scmp.eq.s32.totalorder %s20, 1
    %p57 = por %p55, %p56
    %p59 = scmp.ne.s32.totalorder %s42, %s58
    %p60 = scmp.eq.s32.totalorder %s20, 0
    %p61 = por %p59, %p60
    %s62 = ssub.s32 %s22, 1
    %p63 = scmp.gt.s32.totalorder %s62, 0
    %s64 = scalar_select %p63, %s62, 0
    %s65 = ssub.s32 %s29, 1
    %p66 = scmp.gt.s32.totalorder %s65, 0
    %s67 = scalar_select %p66, %s65, 0
    %s68 = ssub.s32 %s21, %s33
    %s69 = ssub.s32 %s64, %s67
    %s70 = sor.u32 %s68, %s69
    %p71 = scmp.eq.s32.totalorder %s70, 0
    %s73 = sadd.s32 %s72, 1
    %s74 = scalar_select %p71, %s72, %s73
    %p77 = pneg %p71
    %p78 = scmp.eq.s32.totalorder %s14, 1
    %p79 = por %p77, %p78
    %p80 = scmp.ne.s32.totalorder %s72, %s75
    %p81 = scmp.eq.s32.totalorder %s14, 0
    %p82 = por %p80, %p81
    %p83 = scmp.ne.s32.totalorder %s72, %s75
    %p84 = scmp.eq.s32.totalorder %s19, 1
    %p85 = por %p83, %p84
    %p86 = scmp.ne.s32.totalorder %s75, %s76
    %p87 = scmp.eq.s32.totalorder %s19, 0
    %p88 = por %p86, %p87
    %p89 = scmp.ne.s32.totalorder %s75, %s76
    %p90 = scmp.eq.s32.totalorder %s20, 1
    %p91 = por %p89, %p90
    %p93 = scmp.ne.s32.totalorder %s76, %s92
    %p94 = scmp.eq.s32.totalorder %s20, 0
    %p95 = por %p93, %p94
    %s96 = sadd.s32 %s22, 1
    %p97 = scmp.lt.s32.totalorder %s96, 0
    %s98 = scalar_select %p97, %s96, 0
    %s99 = sadd.s32 %s29, 1
    %p100 = scmp.lt.s32.totalorder %s99, 0
    %s101 = scalar_select %p100, %s99, 0
    %s102 = ssub.s32 %s21, %s33
    %s103 = ssub.s32 %s98, %s101
    %s104 = sor.u32 %s102, %s103
    %p105 = scmp.eq.s32.totalorder %s104, 0
    %s107 = sadd.s32 %s106, 1
    %s108 = scalar_select %p105, %s106, %s107
    %p111 = pneg %p105
    %p112 = scmp.eq.s32.totalorder %s14, 1
    %p113 = por %p111, %p112
    %p114 = scmp.ne.s32.totalorder %s106, %s109
    %p115 = scmp.eq.s32.totalorder %s14, 0
    %p116 = por %p114, %p115
    %p117 = scmp.ne.s32.totalorder %s106, %s109
    %p118 = scmp.eq.s32.totalorder %s19, 1
    %p119 = por %p117, %p118
    %p120 = scmp.ne.s32.totalorder %s109, %s110
    %p121 = scmp.eq.s32.totalorder %s19, 0
    %p122 = por %p120, %p121
    %p123 = scmp.ne.s32.totalorder %s109, %s110
    %p124 = scmp.eq.s32.totalorder %s20, 1
    %p125 = por %p123, %p124
    %p127 = scmp.ne.s32.totalorder %s110, %s126
    %p128 = scmp.eq.s32.totalorder %s20, 0
    %p129 = por %p127, %p128
    %s131 = sadd.s32 %s130, 1
    %p134 = scmp.eq.s32.totalorder %s14, 1
    %p135 = scmp.ne.s32.totalorder %s130, %s132
    %p136 = scmp.eq.s32.totalorder %s14, 0
    %p137 = por %p135, %p136
    %p138 = scmp.ne.s32.totalorder %s130, %s132
    %p139 = scmp.eq.s32.totalorder %s19, 1
    %p140 = por %p138, %p139
    %p141 = scmp.ne.s32.totalorder %s132, %s133
    %p142 = scmp.eq.s32.totalorder %s19, 0
    %p143 = por %p141, %p142
    %p144 = scmp.ne.s32.totalorder %s132, %s133
    %p145 = scmp.eq.s32.totalorder %s20, 1
    %p146 = por %p144, %p145
    %p148 = scmp.ne.s32.totalorder %s133, %s147
    %p149 = scmp.eq.s32.totalorder %s20, 0
    %p150 = por %p148, %p149
    %s152 = sadd.s32 %s151, 1
    %p155 = scmp.eq.s32.totalorder %s14, 1
    %p156 = scmp.ne.s32.totalorder %s151, %s153
    %p157 = scmp.eq.s32.totalorder %s14, 0
    %p158 = por %p156, %p157
    %p159 = scmp.ne.s32.totalorder %s151, %s153
    %p160 = scmp.eq.s32.totalorder %s19, 1
    %p161 = por %p159, %p160
    %p162 = scmp.ne.s32.totalorder %s153, %s154
    %p163 = scmp.eq.s32.totalorder %s19, 0
    %p164 = por %p162, %p163
    %p165 = scmp.ne.s32.totalorder %s153, %s154
    %p166 = scmp.eq.s32.totalorder %s20, 1
    %p167 = por %p165, %p166
    %p169 = scmp.ne.s32.totalorder %s154, %s168
    %p170 = scmp.eq.s32.totalorder %s20, 0
    %p171 = por %p169, %p170
    %s173 = sadd.s32 %s172, 1
    %p176 = scmp.eq.s32.totalorder %s14, 1
    %p177 = scmp.ne.s32.totalorder %s172, %s174
    %p178 = scmp.eq.s32.totalorder %s14, 0
    %p179 = por %p177, %p178
    %p180 = scmp.ne.s32.totalorder %s172, %s174
    %p181 = scmp.eq.s32.totalorder %s19, 1
    %p182 = por %p180, %p181
    %p183 = scmp.ne.s32.totalorder %s174, %s175
    %p184 = scmp.eq.s32.totalorder %s19, 0
    %p185 = por %p183, %p184
    %p186 = scmp.ne.s32.totalorder %s174, %s175
    %p187 = scmp.eq.s32.totalorder %s20, 1
    %p188 = por %p186, %p187
    %p190 = scmp.ne.s32.totalorder %s175, %s189
    %p191 = scmp.eq.s32.totalorder %s20, 0
    %p192 = por %p190, %p191
    %s193 = ssub.s32 %s21, %s33
    %s194 = ssub.s32 %s22, %s29
    %s195 = sor.u32 %s193, %s194
    %p196 = scmp.eq.s32.totalorder %s195, 0
    %s198 = sadd.s32 %s197, 1
    %s199 = scalar_select %p196, %s197, %s198
    %p202 = pneg %p196
    %p203 = scmp.eq.s32.totalorder %s14, 1
    %p204 = por %p202, %p203
    %p205 = scmp.ne.s32.totalorder %s197, %s200
    %p206 = scmp.eq.s32.totalorder %s14, 0
    %p207 = por %p205, %p206
    %p208 = scmp.ne.s32.totalorder %s197, %s200
    %p209 = scmp.eq.s32.totalorder %s19, 1
    %p210 = por %p208, %p209
    %p211 = scmp.ne.s32.totalorder %s200, %s201
    %p212 = scmp.eq.s32.totalorder %s19, 0
    %p213 = por %p211, %p212
    %p214 = scmp.ne.s32.totalorder %s200, %s201
    %p215 = scmp.eq.s32.totalorder %s20, 1
    %p216 = por %p214, %p215
    %p218 = scmp.ne.s32.totalorder %s201, %s217
    %p219 = scmp.eq.s32.totalorder %s20, 0
    %p220 = por %p218, %p219
    %s221 = ssub.s32 %s21, %s33
    %s222 = ssub.s32 %s22, %s29
    %s223 = sor.u32 %s221, %s222
    %p224 = scmp.eq.s32.totalorder %s223, 0
    %s226 = sadd.s32 %s225, 1
    %s227 = scalar_select %p224, %s225, %s226
    %p230 = pneg %p224
    %p231 = scmp.eq.s32.totalorder %s14, 1
    %p232 = por %p230, %p231
    %p233 = scmp.ne.s32.totalorder %s225, %s228
    %p234 = scmp.eq.s32.totalorder %s14, 0
    %p235 = por %p233, %p234
    %p236 = scmp.ne.s32.totalorder %s225, %s228
    %p237 = scmp.eq.s32.totalorder %s19, 1
    %p238 = por %p236, %p237
    %p239 = scmp.ne.s32.totalorder %s228, %s229
    %p240 = scmp.eq.s32.totalorder %s19, 0
    %p241 = por %p239, %p240
    %p242 = scmp.ne.s32.totalorder %s228, %s229
    %p243 = scmp.eq.s32.totalorder %s20, 1
    %p244 = por %p242, %p243
    %p246 = scmp.ne.s32.totalorder %s229, %s245
    %p247 = scmp.eq.s32.totalorder %s20, 0
    %p248 = por %p246, %p247
    %p249 = scmp.le.s32.totalorder 1, %s14
    %p250 = scmp.lt.s32.totalorder %s14, 3
    %p251 = pnand %p249, %p250
    %p252 = pneg %p251
    // Predicated region
    $region9: #{conv_block_forward.4} parent=5 // pred_check
      _
    $region10: #{conv_block_forward.4} parent=5 // pred_check_branch
      %254 = sbr.rel (%p251) target = $region12
    $region11: #{conv_block_forward.4} parent=5 // pred_region
      %s255 = ssub.s32 %s14, 1
      // Predicated region
      $region13: #{conv_block_forward.4} parent=11 // pred_check
        %p256 = pneg %p143
      $region14: #{conv_block_forward.4} parent=11 // pred_check_branch
        %258 = sbr.rel (%p256) target = $region16
      $region15: #{conv_block_forward.4} parent=11 // pred_region
        _
      $region16: #{conv_block_forward.4} parent=11 // pred_fallthru
        _
      // Predicated region
      $region17: #{conv_block_forward.4} parent=11 // pred_check
        %p259 = pneg %p164
      $region18: #{conv_block_forward.4} parent=11 // pred_check_branch
        %261 = sbr.rel (%p259) target = $region20
      $region19: #{conv_block_forward.4} parent=11 // pred_region
        _
      $region20: #{conv_block_forward.4} parent=11 // pred_fallthru
        _
      // Predicated region
      $region21: #{conv_block_forward.4} parent=11 // pred_check
        %p262 = pneg %p185
      $region22: #{conv_block_forward.4} parent=11 // pred_check_branch
        %264 = sbr.rel (%p262) target = $region24
      $region23: #{conv_block_forward.4} parent=11 // pred_region
        _
      $region24: #{conv_block_forward.4} parent=11 // pred_fallthru
        _
    $region12: #{conv_block_forward.4} parent=5 // pred_fallthru
      _
    %p265 = scmp.lt.s32.totalorder %s14, 2
    // Predicated region
    $region25: #{conv_block_forward.4} parent=5 // pred_check
      %p266 = pneg %p265
    $region26: #{conv_block_forward.4} parent=5 // pred_check_branch
      %268 = sbr.rel (%p266) target = $region28
    $region27: #{conv_block_forward.4} parent=5 // pred_region
      // Predicated region
      $region29: #{conv_block_forward.4} parent=27 // pred_check
        %p269 = pneg %p48
      $region30: #{conv_block_forward.4} parent=27 // pred_check_branch
        %271 = sbr.rel (%p269) target = $region32
      $region31: #{conv_block_forward.4} parent=27 // pred_region
        %s272 = smul.u32 2, %s22
        %p273 = scmp.lt.s32.totalorder %s21, 1
        %s274 = scalar_select %p273, %s21, 1
        %p275 = scmp.lt.s32.totalorder %s272, 1
        %s276 = scalar_select %p275, %s272, 1
        %s277 = smul.addr %s276, 2
        %s278 = smul.addr %s274, 4
        %s279 = sadd.s32 %s277, %s278
        %s280 = smul.addr %s279, 8
        %s281 = scalar_lea.vmem %s0, %s280
        %s282 = smul.u32 2, %s22
      $region32: #{conv_block_forward.4} parent=27 // pred_fallthru
        _
      // Predicated region
      $region33: #{conv_block_forward.4} parent=27 // pred_check
        %p283 = pneg %p82
      $region34: #{conv_block_forward.4} parent=27 // pred_check_branch
        %285 = sbr.rel (%p283) target = $region36
      $region35: #{conv_block_forward.4} parent=27 // pred_region
        %s286 = ssub.s32 %s22, 1
        %p287 = scmp.gt.s32.totalorder %s286, 0
        %s288 = scalar_select %p287, %s286, 0
        %p289 = scmp.lt.s32.totalorder %s21, 1
        %s290 = scalar_select %p289, %s21, 1
        %p291 = scmp.lt.s32.totalorder %s288, 0
        %s292 = scalar_select %p291, %s288, 0
        %s293 = smul.addr %s292, 2
        %s294 = smul.addr %s290, 2
        %s295 = sadd.s32 %s293, %s294
        %s296 = smul.addr %s295, 2
        %s297 = scalar_lea.vmem %s1, %s296
        %s298 = ssub.s32 %s22, 1
        %p299 = scmp.gt.s32.totalorder %s298, 0
        %s300 = scalar_select %p299, %s298, 0
      $region36: #{conv_block_forward.4} parent=27 // pred_fallthru
        _
      // Predicated region
      $region37: #{conv_block_forward.4} parent=27 // pred_check
        %p301 = pneg %p116
      $region38: #{conv_block_forward.4} parent=27 // pred_check_branch
        %303 = sbr.rel (%p301) target = $region40
      $region39: #{conv_block_forward.4} parent=27 // pred_region
        %s304 = sadd.s32 %s22, 1
        %p305 = scmp.lt.s32.totalorder %s304, 0
        %s306 = scalar_select %p305, %s304, 0
        %p307 = scmp.lt.s32.totalorder %s21, 1
        %s308 = scalar_select %p307, %s21, 1
        %p309 = scmp.lt.s32.totalorder %s306, 0
        %s310 = scalar_select %p309, %s306, 0
        %s311 = smul.addr %s310, 2
        %s312 = smul.addr %s308, 2
        %s313 = sadd.s32 %s311, %s312
        %s314 = smul.addr %s313, 2
        %s315 = scalar_lea.vmem %s2, %s314
        %s316 = sadd.s32 %s22, 1
        %p317 = scmp.lt.s32.totalorder %s316, 0
        %s318 = scalar_select %p317, %s316, 0
      $region40: #{conv_block_forward.4} parent=27 // pred_fallthru
        _
    $region28: #{conv_block_forward.4} parent=5 // pred_fallthru
      _
    %p319 = scmp.le.s32.totalorder 1, %s14
    %p320 = scmp.lt.s32.totalorder %s14, 3
    %p321 = pnand %p319, %p320
    %p322 = pneg %p321
    // Predicated region
    $region41: #{conv_block_forward.4} parent=5 // pred_check
      _
    $region42: #{conv_block_forward.4} parent=5 // pred_check_branch
      %324 = sbr.rel (%p321) target = $region44
    $region43: #{conv_block_forward.4} parent=5 // pred_region
      %s325 = ssub.s32 %s14, 1
      %s326 = smul.u32 2, %s24
      %p327 = scmp.lt.s32.totalorder %s23, 1
      %s328 = scalar_select %p327, %s23, 1
      %p329 = scmp.lt.s32.totalorder %s326, 1
      %s330 = scalar_select %p329, %s326, 1
      %s331 = smul.addr %s330, 2
      %s332 = smul.addr %s328, 4
      %s333 = sadd.s32 %s331, %s332
      %s334 = smul.addr %s333, 8
      %s335 = scalar_lea.vmem %s0, %s334
      %p336 = pneg %p54
      %p337 = pneg %p51
      %s338 = ssub.s32 %s24, 1
      %p339 = scmp.gt.s32.totalorder %s338, 0
      %s340 = scalar_select %p339, %s338, 0
      %p341 = scmp.lt.s32.totalorder %s23, 1
      %s342 = scalar_select %p341, %s23, 1
      %p343 = scmp.lt.s32.totalorder %s340, 0
      %s344 = scalar_select %p343, %s340, 0
      %s345 = smul.addr %s344, 2
      %s346 = smul.addr %s342, 2
      %s347 = sadd.s32 %s345, %s346
      %s348 = smul.addr %s347, 2
      %s349 = scalar_lea.vmem %s1, %s348
      %p350 = pneg %p88
      %p351 = pneg %p85
      %s352 = sadd.s32 %s24, 1
      %p353 = scmp.lt.s32.totalorder %s352, 0
      %s354 = scalar_select %p353, %s352, 0
      %p355 = scmp.lt.s32.totalorder %s23, 1
      %s356 = scalar_select %p355, %s23, 1
      %p357 = scmp.lt.s32.totalorder %s354, 0
      %s358 = scalar_select %p357, %s354, 0
      %s359 = smul.addr %s358, 2
      %s360 = smul.addr %s356, 2
      %s361 = sadd.s32 %s359, %s360
      %s362 = smul.addr %s361, 2
      %s363 = scalar_lea.vmem %s2, %s362
      %p364 = pneg %p122
      %p365 = pneg %p119
      %p366 = pneg %p143
      %p367 = pneg %p140
      %p368 = pneg %p164
      %p369 = pneg %p161
      %p370 = pneg %p185
      %p371 = pneg %p182
      %p372 = pneg %p213
      %p373 = pneg %p210
      %s374 = smul.u32 2, %s24
      %p375 = scmp.lt.s32.totalorder %s23, 1
      %s376 = scalar_select %p375, %s23, 1
      %p377 = scmp.lt.s32.totalorder %s374, 1
      %s378 = scalar_select %p377, %s374, 1
      %s379 = smul.addr %s376, 2
      %s380 = sadd.s32 %s378, %s379
      %s381 = smul.addr %s380, 8
      %s382 = scalar_lea.vmem %s6, %s381
      %p383 = pneg %p241
      %p384 = pneg %p238
      %p385 = scmp.lt.s32.totalorder %s23, 1
      %s386 = scalar_select %p385, %s23, 1
      %p387 = scmp.lt.s32.totalorder %s24, 0
      %s388 = scalar_select %p387, %s24, 0
      %s389 = sadd.s32 %s388, %s386
      %s390 = smul.addr %s389, 2
      %s391 = scalar_lea.vmem %s7, %s390
      %s392 = smul.u32 2, %s24
      %p393 = scmp.lt.s32.totalorder %s23, 1
      %s394 = scalar_select %p393, %s23, 1
      %p395 = scmp.lt.s32.totalorder %s392, 1
      %s396 = scalar_select %p395, %s392, 1
      %s397 = smul.addr %s396, 2
      %s398 = smul.addr %s394, 4
      %s399 = sadd.s32 %s397, %s398
      %s400 = smul.addr %s399, 8
      %s401 = scalar_lea.vmem %s0, %s400
      %s402 = smul.u32 2, %s24
      %s403 = ssub.s32 %s24, 1
      %p404 = scmp.gt.s32.totalorder %s403, 0
      %s405 = scalar_select %p404, %s403, 0
      %p406 = scmp.lt.s32.totalorder %s23, 1
      %s407 = scalar_select %p406, %s23, 1
      %p408 = scmp.lt.s32.totalorder %s405, 0
      %s409 = scalar_select %p408, %s405, 0
      %s410 = smul.addr %s409, 2
      %s411 = smul.addr %s407, 2
      %s412 = sadd.s32 %s410, %s411
      %s413 = smul.addr %s412, 2
      %s414 = scalar_lea.vmem %s1, %s413
      %s415 = ssub.s32 %s24, 1
      %p416 = scmp.gt.s32.totalorder %s415, 0
      %s417 = scalar_select %p416, %s415, 0
      %s418 = sadd.s32 %s24, 1
      %p419 = scmp.lt.s32.totalorder %s418, 0
      %s420 = scalar_select %p419, %s418, 0
      %p421 = scmp.lt.s32.totalorder %s23, 1
      %s422 = scalar_select %p421, %s23, 1
      %p423 = scmp.lt.s32.totalorder %s420, 0
      %s424 = scalar_select %p423, %s420, 0
      %s425 = smul.addr %s424, 2
      %s426 = smul.addr %s422, 2
      %s427 = sadd.s32 %s425, %s426
      %s428 = smul.addr %s427, 2
      %s429 = scalar_lea.vmem %s2, %s428
      %s430 = sadd.s32 %s24, 1
      %p431 = scmp.lt.s32.totalorder %s430, 0
      %s432 = scalar_select %p431, %s430, 0
      %s433 = smul.u32 2, %s24
      %p434 = scmp.lt.s32.totalorder %s23, 1
      %s435 = scalar_select %p434, %s23, 1
      %p436 = scmp.lt.s32.totalorder %s433, 1
      %s437 = scalar_select %p436, %s433, 1
      %s438 = smul.addr %s435, 2
      %s439 = sadd.s32 %s437, %s438
      %s440 = smul.addr %s439, 8
      %s441 = scalar_lea.vmem %s6, %s440
      %s442 = smul.u32 2, %s24
      %p443 = scmp.lt.s32.totalorder %s23, 1
      %s444 = scalar_select %p443, %s23, 1
      %p445 = scmp.lt.s32.totalorder %s24, 0
      %s446 = scalar_select %p445, %s24, 0
      %s447 = sadd.s32 %s446, %s444
      %s448 = smul.addr %s447, 2
      %s449 = scalar_lea.vmem %s7, %s448
      %v450 = vld [vmem:[%s4] sm:$0x3]
      %v451 = vld [vmem:[%s3] sm:$0x3]
      %v452 = vld [vmem:[%s401] sm:$0xff]
      %v453 = vld [vmem:[%s401 + $0x8] sm:$0xff]
      %v454 = vld [vmem:[%s401 + $0x10] sm:$0xff]
      %v455 = vld [vmem:[%s401 + $0x18] sm:$0xff]
      %v457 = vperm.slane %v451, 0
      %v458 = vperm.slane %v451, 1
      %v461 = vmul.f32 %v452, %v457
      %v462 = vmul.f32 %v453, %v458
      %v463 = vmul.f32 %v454, %v457
      %v464 = vmul.f32 %v455, %v458
      %v466 = vperm.slane %v450, 0
      %v467 = vperm.slane %v450, 1
      %v470 = vadd.f32 %v461, %v466
      %v471 = vadd.f32 %v462, %v467
      %v472 = vadd.f32 %v463, %v466
      %v473 = vadd.f32 %v464, %v467
      %v474 = vmax.f32 %v470, 0.0
      %v475 = vmax.f32 %v471, 0.0
      %v476 = vmax.f32 %v472, 0.0
      %v477 = vmax.f32 %v473, 0.0
      %v478 = vld [vmem:[%s414] sm:$0xf]
      %v479 = vld [vmem:[%s429] sm:$0xf]
      %p480 = scmp.gt.s32.totalorder %s24, 0
      %s481 = scalar_select %p480, 1, 0
      %s482 = scvt.s32.f32 %s481
      %p483 = scmp.lt.s32.totalorder %s24, 0
      %s484 = scalar_select %p483, 1, 0
      %s485 = scvt.s32.f32 %s484
      %v487 = vunpack.c.l.s4 857870592
      %v488 = vunpack.c.0.s8 %v487
      %v489 = vperm.slane %v451, %v488
      %v491 = vmul.f32 %v478, %v489
      %v493 = vunpack.c.l.s4 857870592
      %v494 = vunpack.c.0.s8 %v493
      %v495 = vperm.slane %v450, %v494
      %v497 = vadd.f32 %v491, %v495
      %v498 = vmax.f32 %v497, 0.0
      %v499 = vstv %s482
      %v500 = vmul.f32 %v498, %v499
      %v501 = vmul.f32 %v479, %v489
      %v502 = vadd.f32 %v501, %v495
      %v503 = vmax.f32 %v502, 0.0
      %v504 = vstv %s485
      %v505 = vmul.f32 %v503, %v504
      %v507 = vperm.slane %v500, 1
      %v508 = vperm.slane %v500, 3
      %vm515 = vcmask 1040384
      %v516 = vrot.slane %v474, 7
      %v517 = vrot.slane %v475, 7
      %v518 = vrot.slane %v476, 7
      %v519 = vsel %vm515, %v516, %v518
      %v520 = vrot.slane %v477, 7
      %v521 = vsel %vm515, %v517, %v520
      %v529 = vperm.slane %v505, 0
      %v530 = vperm.slane %v505, 2
      %v533 = vsel %vm515, %v507, %v516
      %v534 = vsel %vm515, %v508, %v517
      %v535 = vsel %vm515, %v518, %v529
      %v536 = vsel %vm515, %v520, %v530
      %vm541 = vcmask 1046528
      %v542 = vrot.slane %v533, 1
      %v543 = vrot.slane %v519, 1
      %v544 = vsel %vm541, %v542, %v543
      %v545 = vrot.slane %v534, 1
      %v546 = vrot.slane %v521, 1
      %v547 = vsel %vm541, %v545, %v546
      %v548 = vrot.slane %v535, 1
      %v549 = vsel %vm541, %v543, %v548
      %v550 = vrot.slane %v536, 1
      %v551 = vsel %vm541, %v546, %v550
      %552 = vrot.lane.b32.xlu0 %v544, 16
      %v553 = vpop.permute.xlu0 %552
      %554 = vrot.lane.b32.xlu0 %v547, 16
      %v555 = vpop.permute.xlu0 %554
      %556 = vrot.lane.b32.xlu0 %v549, 16
      %v557 = vpop.permute.xlu0 %556
      %558 = vrot.lane.b32.xlu0 %v551, 16
      %v559 = vpop.permute.xlu0 %558
      %vm560 = vcmask 130048
      %v561 = vsel %vm560, %v553, %v555
      %v562 = vsel %vm560, %v557, %v559
      %vm567 = vcmask 1045504
      %v568 = vrot.slane %v533, 2
      %v569 = vrot.slane %v519, 2
      %v570 = vsel %vm567, %v568, %v569
      %v571 = vrot.slane %v534, 2
      %v572 = vrot.slane %v521, 2
      %v573 = vsel %vm567, %v571, %v572
      %v574 = vrot.slane %v535, 2
      %v575 = vsel %vm567, %v569, %v574
      %v576 = vrot.slane %v536, 2
      %v577 = vsel %vm567, %v572, %v576
      %578 = vrot.lane.b32.xlu0 %v570, 32
      %v579 = vpop.permute.xlu0 %578
      %580 = vrot.lane.b32.xlu0 %v573, 32
      %v581 = vpop.permute.xlu0 %580
      %582 = vrot.lane.b32.xlu0 %v575, 32
      %v583 = vpop.permute.xlu0 %582
      %584 = vrot.lane.b32.xlu0 %v577, 32
      %v585 = vpop.permute.xlu0 %584
      %vm586 = vcmask 261120
      %v587 = vsel %vm586, %v579, %v581
      %v588 = vsel %vm586, %v583, %v585
      %v591 = vsel %vm560, %v534, %v553
      %v592 = vsel %vm560, %v521, %v557
      %v593 = vsel %vm586, %v561, %v579
      %v594 = vsel %vm586, %v562, %v583
      %v595 = vld [vmem:[%s5] sm:$0xff]
      %v596 = vld [vmem:[%s5 + $0x8] sm:$0xff]
      %v597 = vld [vmem:[%s5 + $0x10] sm:$0xff]
      %v598 = vld [vmem:[%s5 + $0x18] sm:$0xff]
      %v599 = vld [vmem:[%s5 + $0x20] sm:$0xff]
      %v600 = vld [vmem:[%s5 + $0x28] sm:$0xff]
      %v601 = vld [vmem:[%s5 + $0x30] sm:$0xff]
      %v602 = vld [vmem:[%s5 + $0x38] sm:$0xff]
      %v603 = vld [vmem:[%s5 + $0x40] sm:$0xff]
      %v604 = vld [vmem:[%s5 + $0x48] sm:$0xff]
      %v605 = vld [vmem:[%s5 + $0x50] sm:$0xff]
      %v606 = vld [vmem:[%s5 + $0x58] sm:$0xff]
      %v607 = vld [vmem:[%s5 + $0x60] sm:$0xff]
      %v608 = vld [vmem:[%s5 + $0x68] sm:$0xff]
      %v609 = vld [vmem:[%s5 + $0x70] sm:$0xff]
      %v610 = vld [vmem:[%s5 + $0x78] sm:$0xff]
      %v611 = vld [vmem:[%s5 + $0x80] sm:$0xff]
      %v612 = vld [vmem:[%s5 + $0x88] sm:$0xff]
      %v613 = vld [vmem:[%s5 + $0x90] sm:$0xff]
      %v614 = vld [vmem:[%s5 + $0x98] sm:$0xff]
      %v615 = vld [vmem:[%s5 + $0xa0] sm:$0xff]
      %v616 = vld [vmem:[%s5 + $0xa8] sm:$0xff]
      %v617 = vld [vmem:[%s5 + $0xb0] sm:$0xff]
      %v618 = vld [vmem:[%s5 + $0xb8] sm:$0xff]
      %v619 = vld [vmem:[%s5 + $0xc0] sm:$0xff]
      %v620 = vld [vmem:[%s5 + $0xc8] sm:$0xff]
      %v621 = vld [vmem:[%s5 + $0xd0] sm:$0xff]
      %v622 = vld [vmem:[%s5 + $0xd8] sm:$0xff]
      %v623 = vld [vmem:[%s5 + $0xe0] sm:$0xff]
      %v624 = vld [vmem:[%s5 + $0xe8] sm:$0xff]
      %v625 = vld [vmem:[%s5 + $0xf0] sm:$0xff]
      %v626 = vld [vmem:[%s5 + $0xf8] sm:$0xff]
      %v627 = vld [vmem:[%s5 + $0x100] sm:$0xff]
      %v628 = vld [vmem:[%s5 + $0x108] sm:$0xff]
      %v629 = vld [vmem:[%s5 + $0x110] sm:$0xff]
      %v630 = vld [vmem:[%s5 + $0x118] sm:$0xff]
      %v631 = vld [vmem:[%s5 + $0x120] sm:$0xff]
      %v632 = vld [vmem:[%s5 + $0x128] sm:$0xff]
      %v633 = vld [vmem:[%s5 + $0x130] sm:$0xff]
      %v634 = vld [vmem:[%s5 + $0x138] sm:$0xff]
      %v635 = vld [vmem:[%s5 + $0x140] sm:$0xff]
      %v636 = vld [vmem:[%s5 + $0x148] sm:$0xff]
      %v637 = vld [vmem:[%s5 + $0x150] sm:$0xff]
      %v638 = vld [vmem:[%s5 + $0x158] sm:$0xff]
      %v639 = vld [vmem:[%s5 + $0x160] sm:$0xff]
      %v640 = vld [vmem:[%s5 + $0x168] sm:$0xff]
      %v641 = vld [vmem:[%s5 + $0x170] sm:$0xff]
      %v642 = vld [vmem:[%s5 + $0x178] sm:$0xff]
      %v643 = vld [vmem:[%s5 + $0x180] sm:$0xff]
      %v644 = vld [vmem:[%s5 + $0x188] sm:$0xff]
      %v645 = vld [vmem:[%s5 + $0x190] sm:$0xff]
      %v646 = vld [vmem:[%s5 + $0x198] sm:$0xff]
      %v647 = vld [vmem:[%s5 + $0x1a0] sm:$0xff]
      %v648 = vld [vmem:[%s5 + $0x1a8] sm:$0xff]
      %vm649 = vcmask 392192
      %v650 = vsel %vm649, %v587, 0
      %v652 = vsel %vm649, %v588, 0
      %654 = vmatpush.msra.mxu0 %v610
      %655 = vmatpush.msra.mxu0 %v609
      %656 = vmatpush.msra.mxu0 %v608
      %657 = vmatpush.msra.mxu0 %v607
      %658 = vmatpush.msra.mxu0 %v606
      %659 = vmatpush.msra.mxu0 %v605
      %660 = vmatpush.msra.mxu0 %v604
      %661 = vmatpush.msra.mxu0 %v603
      %662 = vmatpush.msra.mxu0 %v602
      %663 = vmatpush.msra.mxu0 %v601
      %664 = vmatpush.msra.mxu0 %v600
      %665 = vmatpush.msra.mxu0 %v599
      %666 = vmatpush.msra.mxu0 %v598
      %667 = vmatpush.msra.mxu0 %v597
      %668 = vmatpush.msra.mxu0 %v596
      %669 = vmatpush.msra.mxu0 %v595
      %670 = vmatmul.f32.gmra.mxu0 %v533
      %v671 = vpop.f32.mrf.mxu0
      %v672 = vadd.f32 0.0, %v671
      %673 = vmatmul.f32.gmra.mxu0 %v519
      %v674 = vpop.f32.mrf.mxu0
      %v675 = vadd.f32 0.0, %v674
      %676 = vdwg.mxu0
      %677 = vmatpush.msra.mxu0 %v626
      %678 = vmatpush.msra.mxu0 %v625
      %679 = vmatpush.msra.mxu0 %v624
      %680 = vmatpush.msra.mxu0 %v623
      %681 = vmatpush.msra.mxu0 %v622
      %682 = vmatpush.msra.mxu0 %v621
      %683 = vmatpush.msra.mxu0 %v620
      %684 = vmatpush.msra.mxu0 %v619
      %685 = vmatpush.msra.mxu0 %v618
      %686 = vmatpush.msra.mxu0 %v617
      %687 = vmatpush.msra.mxu0 %v616
      %688 = vmatpush.msra.mxu0 %v615
      %689 = vmatpush.msra.mxu0 %v614
      %690 = vmatpush.msra.mxu0 %v613
      %691 = vmatpush.msra.mxu0 %v612
      %692 = vmatpush.msra.mxu0 %v611
      %693 = vmatmul.f32.gmra.mxu0 %v591
      %v694 = vpop.f32.mrf.mxu0
      %v695 = vadd.f32 %v672, %v694
      %696 = vmatmul.f32.gmra.mxu0 %v592
      %v697 = vpop.f32.mrf.mxu0
      %v698 = vadd.f32 %v675, %v697
      %699 = vdwg.mxu0
      %700 = vmatpush.msra.mxu0 %v642
      %701 = vmatpush.msra.mxu0 %v641
      %702 = vmatpush.msra.mxu0 %v640
      %703 = vmatpush.msra.mxu0 %v639
      %704 = vmatpush.msra.mxu0 %v638
      %705 = vmatpush.msra.mxu0 %v637
      %706 = vmatpush.msra.mxu0 %v636
      %707 = vmatpush.msra.mxu0 %v635
      %708 = vmatpush.msra.mxu0 %v634
      %709 = vmatpush.msra.mxu0 %v633
      %710 = vmatpush.msra.mxu0 %v632
      %711 = vmatpush.msra.mxu0 %v631
      %712 = vmatpush.msra.mxu0 %v630
      %713 = vmatpush.msra.mxu0 %v629
      %714 = vmatpush.msra.mxu0 %v628
      %715 = vmatpush.msra.mxu0 %v627
      %716 = vmatmul.f32.gmra.mxu0 %v593
      %v717 = vpop.f32.mrf.mxu0
      %v718 = vadd.f32 %v695, %v717
      %719 = vmatmul.f32.gmra.mxu0 %v594
      %v720 = vpop.f32.mrf.mxu0
      %v721 = vadd.f32 %v698, %v720
      %722 = vdwg.mxu0
      %723 = vmatpush.msra.mxu0 0.0
      %724 = vmatpush.msra.mxu0 0.0
      %725 = vmatpush.msra.mxu0 0.0
      %726 = vmatpush.msra.mxu0 0.0
      %727 = vmatpush.msra.mxu0 0.0
      %728 = vmatpush.msra.mxu0 0.0
      %729 = vmatpush.msra.mxu0 0.0
      %730 = vmatpush.msra.mxu0 0.0
      %731 = vmatpush.msra.mxu0 0.0
      %732 = vmatpush.msra.mxu0 0.0
      %733 = vmatpush.msra.mxu0 %v648
      %734 = vmatpush.msra.mxu0 %v647
      %735 = vmatpush.msra.mxu0 %v646
      %736 = vmatpush.msra.mxu0 %v645
      %737 = vmatpush.msra.mxu0 %v644
      %738 = vmatpush.msra.mxu0 %v643
      %739 = vmatmul.f32.gmra.mxu0 %v650
      %v740 = vpop.f32.mrf.mxu0
      %v741 = vadd.f32 %v718, %v740
      %742 = vmatmul.f32.gmra.mxu0 %v652
      %v743 = vpop.f32.mrf.mxu0
      %v744 = vadd.f32 %v721, %v743
      %745 = vdwg.mxu0
      %746 = vst [vmem:[%s441] sm:$0xff] %v741
      %747 = vst [vmem:[%s441 + $0x8] sm:$0xff] %v744
      %v748 = vadd.f32 %v741, %v744
      %v749 = vrot.slane %v748, 4
      %v750 = vadd.f32 %v748, %v749
      %v751 = vrot.slane %v750, 2
      %v752 = vadd.f32 %v750, %v751
      %v753 = vrot.slane %v752, 1
      %v754 = vadd.f32 %v752, %v753
      %v755 = vmul.f32 %v741, %v741
      %v756 = vmul.f32 %v744, %v744
      %v757 = vadd.f32 %v755, %v756
      %v758 = vrot.slane %v757, 4
      %v759 = vadd.f32 %v757, %v758
      %v760 = vrot.slane %v759, 2
      %v761 = vadd.f32 %v759, %v760
      %v762 = vrot.slane %v761, 1
      %v763 = vadd.f32 %v761, %v762
      %v764 = vsel %vm515, %v754, %v763
      %765 = vst [vmem:[%s449] sm:$0x3] %v764
      %s766 = smul.u32 2, %s24
      %p767 = scmp.lt.s32.totalorder %s23, 1
      %s768 = scalar_select %p767, %s23, 1
      %p769 = scmp.lt.s32.totalorder %s766, 1
      %s770 = scalar_select %p769, %s766, 1
      %s771 = smul.addr %s768, 2
      %s772 = sadd.s32 %s770, %s771
      %s773 = smul.addr %s772, 8
      %s774 = scalar_lea.vmem %s6, %s773
      %p775 = scmp.lt.s32.totalorder %s23, 1
      %s776 = scalar_select %p775, %s23, 1
      %p777 = scmp.lt.s32.totalorder %s24, 0
      %s778 = scalar_select %p777, %s24, 0
      %s779 = sadd.s32 %s778, %s776
      %s780 = smul.addr %s779, 2
      %s781 = scalar_lea.vmem %s7, %s780
      // Predicated region
      $region45: #{conv_block_forward.4} parent=43 // pred_check
        %p782 = pneg %p210
      $region46: #{conv_block_forward.4} parent=43 // pred_check_branch
        %784 = sbr.rel (%p782) target = $region48
      $region47: #{conv_block_forward.4} parent=43 // pred_region
        %s785 = smul.u32 2, %s24
      $region48: #{conv_block_forward.4} parent=43 // pred_fallthru
        _
      // Predicated region
      $region49: #{conv_block_forward.4} parent=43 // pred_check
        %p786 = pneg %p238
      $region50: #{conv_block_forward.4} parent=43 // pred_check_branch
        %788 = sbr.rel (%p786) target = $region52
      $region51: #{conv_block_forward.4} parent=43 // pred_region
        _
      $region52: #{conv_block_forward.4} parent=43 // pred_fallthru
        _
    $region44: #{conv_block_forward.4} parent=5 // pred_fallthru
      _
    %p789 = scmp.le.s32.totalorder 2, %s14
    // Predicated region
    $region53: #{conv_block_forward.4} parent=5 // pred_check
      %p790 = pneg %p789
    $region54: #{conv_block_forward.4} parent=5 // pred_check_branch
      %792 = sbr.rel (%p790) target = $region56
    $region55: #{conv_block_forward.4} parent=5 // pred_region
      %s793 = ssub.s32 %s14, 2
      // Predicated region
      $region57: #{conv_block_forward.4} parent=55 // pred_check
        %p794 = pneg %p216
      $region58: #{conv_block_forward.4} parent=55 // pred_check_branch
        %796 = sbr.rel (%p794) target = $region60
      $region59: #{conv_block_forward.4} parent=55 // pred_region
        %s797 = smul.u32 2, %s26
        %p798 = scmp.lt.s32.totalorder %s25, 1
        %s799 = scalar_select %p798, %s25, 1
        %p800 = scmp.lt.s32.totalorder %s797, 1
        %s801 = scalar_select %p800, %s797, 1
        %s802 = smul.addr %s799, 2
        %s803 = sadd.s32 %s801, %s802
        %s804 = smul.addr %s803, 8
        %s805 = scalar_lea.vmem %s6, %s804
      $region60: #{conv_block_forward.4} parent=55 // pred_fallthru
        _
      // Predicated region
      $region61: #{conv_block_forward.4} parent=55 // pred_check
        %p806 = pneg %p244
      $region62: #{conv_block_forward.4} parent=55 // pred_check_branch
        %808 = sbr.rel (%p806) target = $region64
      $region63: #{conv_block_forward.4} parent=55 // pred_region
        %p809 = scmp.lt.s32.totalorder %s25, 1
        %s810 = scalar_select %p809, %s25, 1
        %p811 = scmp.lt.s32.totalorder %s26, 0
        %s812 = scalar_select %p811, %s26, 0
        %s813 = sadd.s32 %s812, %s810
        %s814 = smul.addr %s813, 2
        %s815 = scalar_lea.vmem %s7, %s814
      $region64: #{conv_block_forward.4} parent=55 // pred_fallthru
        _
    $region56: #{conv_block_forward.4} parent=5 // pred_fallthru
      _
  $region6: #{conv_block_forward.4} parent=0 // loop_footer
    %s18 = sadd.s32 1, %s14
  $region7: #{conv_block_forward.4} parent=0 // loop_footer_branch
    %13 = sbr.rel target = $region3
  $region8: #{conv_block_forward.4} parent=0 // loop_exit
    _

</llo_original>
